<compile_context>
chip_gen: v5e
topology: v5e:2x2
jax: 0.10.0
libtpu: 0.0.40
codegen_flags: <defaults>
</compile_context>

<pallas_src>
import jax
import jax.numpy as jnp
import numpy as np
from jax.experimental import pallas as pl
from jax.experimental.pallas import tpu as pltpu

SELU_ALPHA = 1.6732632423543772848170429916717
SELU_SCALE = 1.0507009873554804934193349852946

# Fixed basis from the module's ownBasis=True branch, shape (3, 9).
BASIS = jnp.array(
    [
        [-0.21535662, -0.30022025, -0.26041868, -0.314888, -0.45471892,
         -0.3971264, -0.26603645, -0.3896653, -0.33079177],
        [0.34970352, 0.50572443, 0.36894855, 0.07661748, 0.08152138,
         0.02740295, -0.28591475, -0.49375448, -0.38343033],
        [-0.3019736, -0.02775075, 0.29349312, -0.50207216, -0.05312577,
         0.5471206, -0.39858055, -0.09402011, 0.31616086],
    ],
    dtype=jnp.float32,
)


def _choose_images_per_step(N, HW, target_lanes=2048, min_split_lanes=1024):
    """Pick how many images to fold into the lane axis per grid step.

    Targets ~2048 lanes per step (amortises fixed step overhead), but on v7x
    (2 TensorCores) prefers >= 2 'parallel' grid steps when each step would
    still get a reasonably wide lane extent.
    """
    divisors = [d for d in range(1, N + 1) if N % d == 0]
    cap = max(1, target_lanes // HW)
    B = max([d for d in divisors if d <= cap])
    if N // B < 2:
        alt = [d for d in divisors if N // d >= 2 and d * HW >= min_split_lanes]
        if alt:
            B = max(alt)
    return B


def _make_conv_selu_kernel(B, C_IN, C_OUT_PAD, HW, W):
    """3x3 conv (pad=1, stride=1) + bias + SELU for B images per grid step.

    Layout: spatial is flattened (flat = h*W + w) onto the 128-lane axis.  For
    each image the kernel forms the nine conv taps as lane rolls of the
    (C_IN, HW) slab, zeroes the padding border by multiplying with a
    precomputed (step-invariant) mask row, and accumulates nine small
    (C_OUT_PAD, C_IN) x (C_IN, HW) MXU dots — the im2col never touches VMEM.
    """

    def kernel(w_ref, b_ref, m_ref, x_ref, o_ref):
        # w_ref: VMEM (9, C_OUT_PAD, C_IN)   weights, tap-major t=(dy+1)*3+(dx+1)
        # b_ref: VMEM (C_OUT_PAD, 1)         bias (f32)
        # m_ref: VMEM (9, HW)                0/1 zero-padding validity masks
        # x_ref: VMEM (B, C_IN, HW)          B input images, spatial flattened
        # o_ref: VMEM (B, C_OUT_PAD, HW)     output block
        bias = b_ref[...]                                   # (C_OUT_PAD, 1)
        # Hoist step-invariant tap weights / masks out of the per-image loop.
        w_taps = [w_ref[t] for t in range(9)]               # each (C_OUT_PAD, C_IN)
        m_taps = [m_ref[t:t + 1, :] for t in range(9)]      # each (1, HW)

        for b in range(B):                                  # static, unrolled
            xb = x_ref[b]                                   # (C_IN, HW)
            acc = None
            for t in range(9):
                dy = t // 3 - 1
                dx = t % 3 - 1
                d = dy * W + dx
                # shifted[:, p] = xb[:, p + d] (circular); positions where the
                # tap would fall outside the image (incl. every wrap-around)
                # are zeroed by the mask, reproducing the zero padding.
                shifted = xb if d == 0 else pltpu.roll(xb, shift=(-d) % HW, axis=1)
                tap = shifted * m_taps[t]                   # (C_IN, HW)
                part = jnp.dot(w_taps[t], tap,
                               preferred_element_type=jnp.float32)
                acc = part if acc is None else acc + part   # (C_OUT_PAD, HW) f32
            acc = acc + bias

            # SELU: scale * (x if x > 0 else alpha * (exp(x) - 1)).
            # Clamp the exp argument so the discarded branch never produces inf.
            neg = SELU_ALPHA * (jnp.exp(jnp.minimum(acc, 0.0)) - 1.0)
            out = SELU_SCALE * jnp.where(acc > 0, acc, neg)
            o_ref[b] = out.astype(o_ref.dtype)

    return kernel


def conv_selu_svd(x, params, bias, basis=BASIS, stride=1, maxpool=False,
                  images_per_step=None, use_bf16_operands=False):
    """Forward pass of ConvSeluSVD.

    x:      (N, C_in, H, W) float32, NCHW
    params: (C_out*C_in, 1, 3)
    bias:   (C_out,)
    basis:  (3, 9)
    use_bf16_operands: halve operand traffic on v6e/v7x (looser tolerance);
                       keep False on v5e / for tight f32 checks.
    """
    N, C_IN, H, W = x.shape
    C_OUT = bias.shape[0]
    HW = H * W
    C_OUT_PAD = -(-C_OUT // 8) * 8                      # sublane-dense epilogue
    operand_dtype = jnp.bfloat16 if use_bf16_operands else jnp.float32

    # Weight generation (parameter setup, stays in JAX glue):
    #   bmm(params, expand(basis)) == (C_out*C_in, 3) @ (3, 9)
    weights = (params.reshape(C_OUT * C_IN, 3) @ basis).reshape(
        C_OUT, C_IN, 3, 3)
    # Tap-major layout (9, C_OUT_PAD, C_IN) with t = ky*3 + kx (dy=ky-1, dx=kx-1).
    w_taps = jnp.transpose(weights, (2, 3, 0, 1)).reshape(9, C_OUT, C_IN)
    w_taps = jnp.pad(w_taps, ((0, 0), (0, C_OUT_PAD - C_OUT), (0, 0)))
    w_taps = w_taps.astype(operand_dtype)
    b_col = jnp.pad(bias, (0, C_OUT_PAD - C_OUT)).reshape(
        C_OUT_PAD, 1).astype(jnp.float32)

    # Step-invariant zero-padding validity masks, one (HW,) row per tap.
    flat = jnp.arange(HW, dtype=jnp.int32)
    row, col = flat // W, flat % W
    mask_rows = []
    for t in range(9):
        dy, dx = t // 3 - 1, t % 3 - 1
        mask_rows.append((row + dy >= 0) & (row + dy < H) &
                         (col + dx >= 0) & (col + dx < W))
    mask_arr = jnp.stack(mask_rows, axis=0).astype(operand_dtype)   # (9, HW)

    # Flatten spatial onto the lane axis (pure contiguous reshape, no copy).
    x_flat = x.reshape(N, C_IN, HW).astype(operand_dtype)

    B = (_choose_images_per_step(N, HW) if images_per_step is None
         else images_per_step)
    assert N % B == 0, "images_per_step must divide the batch size"
    grid = (N // B,)

    out_flat = pl.pallas_call(
        _make_conv_selu_kernel(B, C_IN, C_OUT_PAD, HW, W),
        out_shape=jax.ShapeDtypeStruct((N, C_OUT_PAD, HW), jnp.float32),
        grid=grid,
        in_specs=[
            pl.BlockSpec((9, C_OUT_PAD, C_IN), lambda g: (0, 0, 0)),  # weights
            pl.BlockSpec((C_OUT_PAD, 1), lambda g: (0, 0)),           # bias
            pl.BlockSpec((9, HW), lambda g: (0, 0)),                  # masks
            pl.BlockSpec((B, C_IN, HW), lambda g: (g, 0, 0)),         # images
        ],
        out_specs=pl.BlockSpec((B, C_OUT_PAD, HW), lambda g: (g, 0, 0)),
        compiler_params=pltpu.CompilerParams(
            dimension_semantics=("parallel",)),
    )(w_taps, b_col, mask_arr, x_flat)

    # Drop the padded output channels, fold spatial back to (H, W) — both are
    # cheap layout plumbing on a contiguous array.
    out = out_flat[:, :C_OUT, :].reshape(N, C_OUT, H, W)

    if stride > 1:
        # TODO(synk): subsample in the kernel epilogue instead (stride^2 less
        # conv work and 4x less HBM writeback); exact here because bias+SELU
        # are pointwise, so subsampling the stride-1 output is equivalent.
        out = out[:, :, ::stride, ::stride]

    if maxpool:
        # TODO(synk): fuse the 2x2 maxpool into the kernel epilogue (lane-pair
        # max via pltpu.roll + sublane-pair max) to avoid this full-resolution
        # HBM round trip through reduce_window.
        out = jax.lax.reduce_window(
            out, -jnp.inf, jax.lax.max,
            window_dimensions=(1, 1, 2, 2),
            window_strides=(1, 1, 2, 2),
            padding="VALID")
    return out


if __name__ == "__main__":
    N, C_IN, C_OUT, H, W = 2, 4, 4, 16, 16

    key = jax.random.PRNGKey(0)
    k_params, k_x = jax.random.split(key)

    # Deterministic parameter init matching the module's shapes:
    # params ~ N(0, 0.02), bias = 0
    params = 0.02 * jax.random.normal(
        k_params, (C_OUT * C_IN, 1, 3), dtype=jnp.float32)
    bias = jnp.zeros((C_OUT,), dtype=jnp.float32)

    x = jax.random.normal(k_x, (N, C_IN, H, W), dtype=jnp.float32)

    out = conv_selu_svd(x, params, bias, BASIS, stride=1, maxpool=False)
    out = jax.block_until_ready(out)

    # Pure-JAX reference for correctness.
    weights_ref = (params.reshape(C_OUT * C_IN, 3) @ BASIS).reshape(
        C_OUT, C_IN, 3, 3)
    ref = jax.lax.conv_general_dilated(
        x, weights_ref, window_strides=(1, 1), padding="SAME",
        dimension_numbers=("NCHW", "OIHW", "NCHW"))
    ref = ref + bias[None, :, None, None]
    ref = jax.nn.selu(ref)

    np.testing.assert_allclose(np.asarray(out), np.asarray(ref),
                               rtol=1e-5, atol=1e-5)
    print("KERNEL_OK")
</pallas_src>

<mosaic_0001>
module attributes {stable_mosaic.version = 11 : i64} {
  func.func @kernel(%arg0: i32, %arg1: memref<9x8x4xf32, #tpu.memory_space<vmem>>, %arg2: memref<8x1xf32, #tpu.memory_space<vmem>>, %arg3: memref<9x256xf32, #tpu.memory_space<vmem>>, %arg4: memref<2x4x256xf32, #tpu.memory_space<vmem>>, %arg5: memref<2x8x256xf32, #tpu.memory_space<vmem>>) attributes {dimension_semantics = [#tpu.dimension_semantics<parallel>], iteration_bounds = array<i64: 1>, scalar_prefetch = 0 : i64, scratch_operands = 0 : i64, tpu.core_type = #tpu.core_type<tc>, window_params = [{pipeline_mode = #tpu.pipeline_mode<synchronous>, transform_indices = @transform_0, window_bounds = array<i64: 9, 8, 4>}, {pipeline_mode = #tpu.pipeline_mode<synchronous>, transform_indices = @transform_1, window_bounds = array<i64: 8, 1>}, {pipeline_mode = #tpu.pipeline_mode<synchronous>, transform_indices = @transform_2, window_bounds = array<i64: 9, 256>}, {transform_indices = @transform_3, window_bounds = array<i64: 2, 4, 256>}, {transform_indices = @transform_4, window_bounds = array<i64: 2, 8, 256>}]} {
    %c0 = arith.constant 0 : index
    %c0_0 = arith.constant 0 : index
    %0 = vector.load %arg2[%c0, %c0_0] : memref<8x1xf32, #tpu.memory_space<vmem>>, vector<8x1xf32>
    %c0_1 = arith.constant 0 : index
    %c0_2 = arith.constant 0 : index
    %c0_3 = arith.constant 0 : index
    %1 = vector.load %arg1[%c0_1, %c0_2, %c0_3] : memref<9x8x4xf32, #tpu.memory_space<vmem>>, vector<1x8x4xf32>
    %2 = vector.shape_cast %1 : vector<1x8x4xf32> to vector<8x4xf32>
    %c1 = arith.constant 1 : index
    %c0_4 = arith.constant 0 : index
    %c0_5 = arith.constant 0 : index
    %3 = vector.load %arg1[%c1, %c0_4, %c0_5] : memref<9x8x4xf32, #tpu.memory_space<vmem>>, vector<1x8x4xf32>
    %4 = vector.shape_cast %3 : vector<1x8x4xf32> to vector<8x4xf32>
    %c2 = arith.constant 2 : index
    %c0_6 = arith.constant 0 : index
    %c0_7 = arith.constant 0 : index
    %5 = vector.load %arg1[%c2, %c0_6, %c0_7] : memref<9x8x4xf32, #tpu.memory_space<vmem>>, vector<1x8x4xf32>
    %6 = vector.shape_cast %5 : vector<1x8x4xf32> to vector<8x4xf32>
    %c3 = arith.constant 3 : index
    %c0_8 = arith.constant 0 : index
    %c0_9 = arith.constant 0 : index
    %7 = vector.load %arg1[%c3, %c0_8, %c0_9] : memref<9x8x4xf32, #tpu.memory_space<vmem>>, vector<1x8x4xf32>
    %8 = vector.shape_cast %7 : vector<1x8x4xf32> to vector<8x4xf32>
    %c4 = arith.constant 4 : index
    %c0_10 = arith.constant 0 : index
    %c0_11 = arith.constant 0 : index
    %9 = vector.load %arg1[%c4, %c0_10, %c0_11] : memref<9x8x4xf32, #tpu.memory_space<vmem>>, vector<1x8x4xf32>
    %10 = vector.shape_cast %9 : vector<1x8x4xf32> to vector<8x4xf32>
    %c5 = arith.constant 5 : index
    %c0_12 = arith.constant 0 : index
    %c0_13 = arith.constant 0 : index
    %11 = vector.load %arg1[%c5, %c0_12, %c0_13] : memref<9x8x4xf32, #tpu.memory_space<vmem>>, vector<1x8x4xf32>
    %12 = vector.shape_cast %11 : vector<1x8x4xf32> to vector<8x4xf32>
    %c6 = arith.constant 6 : index
    %c0_14 = arith.constant 0 : index
    %c0_15 = arith.constant 0 : index
    %13 = vector.load %arg1[%c6, %c0_14, %c0_15] : memref<9x8x4xf32, #tpu.memory_space<vmem>>, vector<1x8x4xf32>
    %14 = vector.shape_cast %13 : vector<1x8x4xf32> to vector<8x4xf32>
    %c7 = arith.constant 7 : index
    %c0_16 = arith.constant 0 : index
    %c0_17 = arith.constant 0 : index
    %15 = vector.load %arg1[%c7, %c0_16, %c0_17] : memref<9x8x4xf32, #tpu.memory_space<vmem>>, vector<1x8x4xf32>
    %16 = vector.shape_cast %15 : vector<1x8x4xf32> to vector<8x4xf32>
    %c8 = arith.constant 8 : index
    %c0_18 = arith.constant 0 : index
    %c0_19 = arith.constant 0 : index
    %17 = vector.load %arg1[%c8, %c0_18, %c0_19] : memref<9x8x4xf32, #tpu.memory_space<vmem>>, vector<1x8x4xf32>
    %18 = vector.shape_cast %17 : vector<1x8x4xf32> to vector<8x4xf32>
    %c0_20 = arith.constant 0 : index
    %c0_21 = arith.constant 0 : index
    %19 = vector.load %arg3[%c0_20, %c0_21] : memref<9x256xf32, #tpu.memory_space<vmem>>, vector<1x256xf32>
    %c1_22 = arith.constant 1 : index
    %c0_23 = arith.constant 0 : index
    %20 = vector.load %arg3[%c1_22, %c0_23] : memref<9x256xf32, #tpu.memory_space<vmem>>, vector<1x256xf32>
    %c2_24 = arith.constant 2 : index
    %c0_25 = arith.constant 0 : index
    %21 = vector.load %arg3[%c2_24, %c0_25] : memref<9x256xf32, #tpu.memory_space<vmem>>, vector<1x256xf32>
    %c3_26 = arith.constant 3 : index
    %c0_27 = arith.constant 0 : index
    %22 = vector.load %arg3[%c3_26, %c0_27] : memref<9x256xf32, #tpu.memory_space<vmem>>, vector<1x256xf32>
    %c4_28 = arith.constant 4 : index
    %c0_29 = arith.constant 0 : index
    %23 = vector.load %arg3[%c4_28, %c0_29] : memref<9x256xf32, #tpu.memory_space<vmem>>, vector<1x256xf32>
    %c5_30 = arith.constant 5 : index
    %c0_31 = arith.constant 0 : index
    %24 = vector.load %arg3[%c5_30, %c0_31] : memref<9x256xf32, #tpu.memory_space<vmem>>, vector<1x256xf32>
    %c6_32 = arith.constant 6 : index
    %c0_33 = arith.constant 0 : index
    %25 = vector.load %arg3[%c6_32, %c0_33] : memref<9x256xf32, #tpu.memory_space<vmem>>, vector<1x256xf32>
    %c7_34 = arith.constant 7 : index
    %c0_35 = arith.constant 0 : index
    %26 = vector.load %arg3[%c7_34, %c0_35] : memref<9x256xf32, #tpu.memory_space<vmem>>, vector<1x256xf32>
    %c8_36 = arith.constant 8 : index
    %c0_37 = arith.constant 0 : index
    %27 = vector.load %arg3[%c8_36, %c0_37] : memref<9x256xf32, #tpu.memory_space<vmem>>, vector<1x256xf32>
    %c0_38 = arith.constant 0 : index
    %c0_39 = arith.constant 0 : index
    %c0_40 = arith.constant 0 : index
    %28 = vector.load %arg4[%c0_38, %c0_39, %c0_40] : memref<2x4x256xf32, #tpu.memory_space<vmem>>, vector<1x4x256xf32>
    %29 = vector.shape_cast %28 : vector<1x4x256xf32> to vector<4x256xf32>
    %c17_i32 = arith.constant 17 : i32
    %30 = tpu.dynamic_rotate %29 by %c17_i32 dim 1 : vector<4x256xf32>, i32 -> vector<4x256xf32>
    %31 = vector.broadcast %19 : vector<1x256xf32> to vector<4x256xf32>
    %32 = arith.mulf %30, %31 : vector<4x256xf32>
    %cst = arith.constant dense<0.000000e+00> : vector<8x256xf32>
    %33 = tpu.matmul %2, %32, %cst {dimension_numbers = #tpu.dot_dimension_numbers<[1], [0], [0], [1], [0, 0, 1, 1], [], []>} : vector<8x4xf32>, vector<4x256xf32>, vector<8x256xf32> -> vector<8x256xf32>
    %c16_i32 = arith.constant 16 : i32
    %34 = tpu.dynamic_rotate %29 by %c16_i32 dim 1 : vector<4x256xf32>, i32 -> vector<4x256xf32>
    %35 = vector.broadcast %20 : vector<1x256xf32> to vector<4x256xf32>
    %36 = arith.mulf %34, %35 : vector<4x256xf32>
    %cst_41 = arith.constant dense<0.000000e+00> : vector<8x256xf32>
    %37 = tpu.matmul %4, %36, %cst_41 {dimension_numbers = #tpu.dot_dimension_numbers<[1], [0], [0], [1], [0, 0, 1, 1], [], []>} : vector<8x4xf32>, vector<4x256xf32>, vector<8x256xf32> -> vector<8x256xf32>
    %38 = arith.addf %33, %37 : vector<8x256xf32>
    %c15_i32 = arith.constant 15 : i32
    %39 = tpu.dynamic_rotate %29 by %c15_i32 dim 1 : vector<4x256xf32>, i32 -> vector<4x256xf32>
    %40 = vector.broadcast %21 : vector<1x256xf32> to vector<4x256xf32>
    %41 = arith.mulf %39, %40 : vector<4x256xf32>
    %cst_42 = arith.constant dense<0.000000e+00> : vector<8x256xf32>
    %42 = tpu.matmul %6, %41, %cst_42 {dimension_numbers = #tpu.dot_dimension_numbers<[1], [0], [0], [1], [0, 0, 1, 1], [], []>} : vector<8x4xf32>, vector<4x256xf32>, vector<8x256xf32> -> vector<8x256xf32>
    %43 = arith.addf %38, %42 : vector<8x256xf32>
    %c1_i32 = arith.constant 1 : i32
    %44 = tpu.dynamic_rotate %29 by %c1_i32 dim 1 : vector<4x256xf32>, i32 -> vector<4x256xf32>
    %45 = vector.broadcast %22 : vector<1x256xf32> to vector<4x256xf32>
    %46 = arith.mulf %44, %45 : vector<4x256xf32>
    %cst_43 = arith.constant dense<0.000000e+00> : vector<8x256xf32>
    %47 = tpu.matmul %8, %46, %cst_43 {dimension_numbers = #tpu.dot_dimension_numbers<[1], [0], [0], [1], [0, 0, 1, 1], [], []>} : vector<8x4xf32>, vector<4x256xf32>, vector<8x256xf32> -> vector<8x256xf32>
    %48 = arith.addf %43, %47 : vector<8x256xf32>
    %49 = vector.broadcast %23 : vector<1x256xf32> to vector<4x256xf32>
    %50 = arith.mulf %29, %49 : vector<4x256xf32>
    %cst_44 = arith.constant dense<0.000000e+00> : vector<8x256xf32>
    %51 = tpu.matmul %10, %50, %cst_44 {dimension_numbers = #tpu.dot_dimension_numbers<[1], [0], [0], [1], [0, 0, 1, 1], [], []>} : vector<8x4xf32>, vector<4x256xf32>, vector<8x256xf32> -> vector<8x256xf32>
    %52 = arith.addf %48, %51 : vector<8x256xf32>
    %c255_i32 = arith.constant 255 : i32
    %53 = tpu.dynamic_rotate %29 by %c255_i32 dim 1 : vector<4x256xf32>, i32 -> vector<4x256xf32>
    %54 = vector.broadcast %24 : vector<1x256xf32> to vector<4x256xf32>
    %55 = arith.mulf %53, %54 : vector<4x256xf32>
    %cst_45 = arith.constant dense<0.000000e+00> : vector<8x256xf32>
    %56 = tpu.matmul %12, %55, %cst_45 {dimension_numbers = #tpu.dot_dimension_numbers<[1], [0], [0], [1], [0, 0, 1, 1], [], []>} : vector<8x4xf32>, vector<4x256xf32>, vector<8x256xf32> -> vector<8x256xf32>
    %57 = arith.addf %52, %56 : vector<8x256xf32>
    %c241_i32 = arith.constant 241 : i32
    %58 = tpu.dynamic_rotate %29 by %c241_i32 dim 1 : vector<4x256xf32>, i32 -> vector<4x256xf32>
    %59 = vector.broadcast %25 : vector<1x256xf32> to vector<4x256xf32>
    %60 = arith.mulf %58, %59 : vector<4x256xf32>
    %cst_46 = arith.constant dense<0.000000e+00> : vector<8x256xf32>
    %61 = tpu.matmul %14, %60, %cst_46 {dimension_numbers = #tpu.dot_dimension_numbers<[1], [0], [0], [1], [0, 0, 1, 1], [], []>} : vector<8x4xf32>, vector<4x256xf32>, vector<8x256xf32> -> vector<8x256xf32>
    %62 = arith.addf %57, %61 : vector<8x256xf32>
    %c240_i32 = arith.constant 240 : i32
    %63 = tpu.dynamic_rotate %29 by %c240_i32 dim 1 : vector<4x256xf32>, i32 -> vector<4x256xf32>
    %64 = vector.broadcast %26 : vector<1x256xf32> to vector<4x256xf32>
    %65 = arith.mulf %63, %64 : vector<4x256xf32>
    %cst_47 = arith.constant dense<0.000000e+00> : vector<8x256xf32>
    %66 = tpu.matmul %16, %65, %cst_47 {dimension_numbers = #tpu.dot_dimension_numbers<[1], [0], [0], [1], [0, 0, 1, 1], [], []>} : vector<8x4xf32>, vector<4x256xf32>, vector<8x256xf32> -> vector<8x256xf32>
    %67 = arith.addf %62, %66 : vector<8x256xf32>
    %c239_i32 = arith.constant 239 : i32
    %68 = tpu.dynamic_rotate %29 by %c239_i32 dim 1 : vector<4x256xf32>, i32 -> vector<4x256xf32>
    %69 = vector.broadcast %27 : vector<1x256xf32> to vector<4x256xf32>
    %70 = arith.mulf %68, %69 : vector<4x256xf32>
    %cst_48 = arith.constant dense<0.000000e+00> : vector<8x256xf32>
    %71 = tpu.matmul %18, %70, %cst_48 {dimension_numbers = #tpu.dot_dimension_numbers<[1], [0], [0], [1], [0, 0, 1, 1], [], []>} : vector<8x4xf32>, vector<4x256xf32>, vector<8x256xf32> -> vector<8x256xf32>
    %72 = arith.addf %67, %71 : vector<8x256xf32>
    %73 = vector.broadcast %0 : vector<8x1xf32> to vector<8x256xf32>
    %74 = arith.addf %72, %73 : vector<8x256xf32>
    %cst_49 = arith.constant 0.000000e+00 : f32
    %75 = vector.broadcast %cst_49 : f32 to vector<8x256xf32>
    %76 = arith.minimumf %74, %75 : vector<8x256xf32>
    %77 = math.exp %76 : vector<8x256xf32>
    %cst_50 = arith.constant 1.000000e+00 : f32
    %78 = vector.broadcast %cst_50 : f32 to vector<8x256xf32>
    %79 = arith.subf %77, %78 : vector<8x256xf32>
    %cst_51 = arith.constant 1.67326319 : f32
    %80 = vector.broadcast %cst_51 : f32 to vector<8x256xf32>
    %81 = arith.mulf %80, %79 : vector<8x256xf32>
    %cst_52 = arith.constant 0.000000e+00 : f32
    %82 = vector.broadcast %cst_52 : f32 to vector<8x256xf32>
    %83 = arith.cmpf ogt, %74, %82 : vector<8x256xf32>
    %84 = arith.select %83, %74, %81 : vector<8x256xi1>, vector<8x256xf32>
    %cst_53 = arith.constant 1.05070102 : f32
    %85 = vector.broadcast %cst_53 : f32 to vector<8x256xf32>
    %86 = arith.mulf %85, %84 : vector<8x256xf32>
    %c0_54 = arith.constant 0 : index
    %c0_55 = arith.constant 0 : index
    %c0_56 = arith.constant 0 : index
    %87 = vector.load %arg5[%c0_54, %c0_55, %c0_56] : memref<2x8x256xf32, #tpu.memory_space<vmem>>, vector<1x8x256xf32>
    %88 = vector.shape_cast %87 : vector<1x8x256xf32> to vector<8x256xf32>
    %89 = vector.shape_cast %86 : vector<8x256xf32> to vector<1x8x256xf32>
    tpu.vector_store %arg5[%c0_54, %c0_55, %c0_56], %89 {strides = array<i32>} : memref<2x8x256xf32, #tpu.memory_space<vmem>>, vector<1x8x256xf32>,
    %c1_57 = arith.constant 1 : index
    %c0_58 = arith.constant 0 : index
    %c0_59 = arith.constant 0 : index
    %90 = vector.load %arg4[%c1_57, %c0_58, %c0_59] : memref<2x4x256xf32, #tpu.memory_space<vmem>>, vector<1x4x256xf32>
    %91 = vector.shape_cast %90 : vector<1x4x256xf32> to vector<4x256xf32>
    %c17_i32_60 = arith.constant 17 : i32
    %92 = tpu.dynamic_rotate %91 by %c17_i32_60 dim 1 : vector<4x256xf32>, i32 -> vector<4x256xf32>
    %93 = vector.broadcast %19 : vector<1x256xf32> to vector<4x256xf32>
    %94 = arith.mulf %92, %93 : vector<4x256xf32>
    %cst_61 = arith.constant dense<0.000000e+00> : vector<8x256xf32>
    %95 = tpu.matmul %2, %94, %cst_61 {dimension_numbers = #tpu.dot_dimension_numbers<[1], [0], [0], [1], [0, 0, 1, 1], [], []>} : vector<8x4xf32>, vector<4x256xf32>, vector<8x256xf32> -> vector<8x256xf32>
    %c16_i32_62 = arith.constant 16 : i32
    %96 = tpu.dynamic_rotate %91 by %c16_i32_62 dim 1 : vector<4x256xf32>, i32 -> vector<4x256xf32>
    %97 = vector.broadcast %20 : vector<1x256xf32> to vector<4x256xf32>
    %98 = arith.mulf %96, %97 : vector<4x256xf32>
    %cst_63 = arith.constant dense<0.000000e+00> : vector<8x256xf32>
    %99 = tpu.matmul %4, %98, %cst_63 {dimension_numbers = #tpu.dot_dimension_numbers<[1], [0], [0], [1], [0, 0, 1, 1], [], []>} : vector<8x4xf32>, vector<4x256xf32>, vector<8x256xf32> -> vector<8x256xf32>
    %100 = arith.addf %95, %99 : vector<8x256xf32>
    %c15_i32_64 = arith.constant 15 : i32
    %101 = tpu.dynamic_rotate %91 by %c15_i32_64 dim 1 : vector<4x256xf32>, i32 -> vector<4x256xf32>
    %102 = vector.broadcast %21 : vector<1x256xf32> to vector<4x256xf32>
    %103 = arith.mulf %101, %102 : vector<4x256xf32>
    %cst_65 = arith.constant dense<0.000000e+00> : vector<8x256xf32>
    %104 = tpu.matmul %6, %103, %cst_65 {dimension_numbers = #tpu.dot_dimension_numbers<[1], [0], [0], [1], [0, 0, 1, 1], [], []>} : vector<8x4xf32>, vector<4x256xf32>, vector<8x256xf32> -> vector<8x256xf32>
    %105 = arith.addf %100, %104 : vector<8x256xf32>
    %c1_i32_66 = arith.constant 1 : i32
    %106 = tpu.dynamic_rotate %91 by %c1_i32_66 dim 1 : vector<4x256xf32>, i32 -> vector<4x256xf32>
    %107 = vector.broadcast %22 : vector<1x256xf32> to vector<4x256xf32>
    %108 = arith.mulf %106, %107 : vector<4x256xf32>
    %cst_67 = arith.constant dense<0.000000e+00> : vector<8x256xf32>
    %109 = tpu.matmul %8, %108, %cst_67 {dimension_numbers = #tpu.dot_dimension_numbers<[1], [0], [0], [1], [0, 0, 1, 1], [], []>} : vector<8x4xf32>, vector<4x256xf32>, vector<8x256xf32> -> vector<8x256xf32>
    %110 = arith.addf %105, %109 : vector<8x256xf32>
    %111 = vector.broadcast %23 : vector<1x256xf32> to vector<4x256xf32>
    %112 = arith.mulf %91, %111 : vector<4x256xf32>
    %cst_68 = arith.constant dense<0.000000e+00> : vector<8x256xf32>
    %113 = tpu.matmul %10, %112, %cst_68 {dimension_numbers = #tpu.dot_dimension_numbers<[1], [0], [0], [1], [0, 0, 1, 1], [], []>} : vector<8x4xf32>, vector<4x256xf32>, vector<8x256xf32> -> vector<8x256xf32>
    %114 = arith.addf %110, %113 : vector<8x256xf32>
    %c255_i32_69 = arith.constant 255 : i32
    %115 = tpu.dynamic_rotate %91 by %c255_i32_69 dim 1 : vector<4x256xf32>, i32 -> vector<4x256xf32>
    %116 = vector.broadcast %24 : vector<1x256xf32> to vector<4x256xf32>
    %117 = arith.mulf %115, %116 : vector<4x256xf32>
    %cst_70 = arith.constant dense<0.000000e+00> : vector<8x256xf32>
    %118 = tpu.matmul %12, %117, %cst_70 {dimension_numbers = #tpu.dot_dimension_numbers<[1], [0], [0], [1], [0, 0, 1, 1], [], []>} : vector<8x4xf32>, vector<4x256xf32>, vector<8x256xf32> -> vector<8x256xf32>
    %119 = arith.addf %114, %118 : vector<8x256xf32>
    %c241_i32_71 = arith.constant 241 : i32
    %120 = tpu.dynamic_rotate %91 by %c241_i32_71 dim 1 : vector<4x256xf32>, i32 -> vector<4x256xf32>
    %121 = vector.broadcast %25 : vector<1x256xf32> to vector<4x256xf32>
    %122 = arith.mulf %120, %121 : vector<4x256xf32>
    %cst_72 = arith.constant dense<0.000000e+00> : vector<8x256xf32>
    %123 = tpu.matmul %14, %122, %cst_72 {dimension_numbers = #tpu.dot_dimension_numbers<[1], [0], [0], [1], [0, 0, 1, 1], [], []>} : vector<8x4xf32>, vector<4x256xf32>, vector<8x256xf32> -> vector<8x256xf32>
    %124 = arith.addf %119, %123 : vector<8x256xf32>
    %c240_i32_73 = arith.constant 240 : i32
    %125 = tpu.dynamic_rotate %91 by %c240_i32_73 dim 1 : vector<4x256xf32>, i32 -> vector<4x256xf32>
    %126 = vector.broadcast %26 : vector<1x256xf32> to vector<4x256xf32>
    %127 = arith.mulf %125, %126 : vector<4x256xf32>
    %cst_74 = arith.constant dense<0.000000e+00> : vector<8x256xf32>
    %128 = tpu.matmul %16, %127, %cst_74 {dimension_numbers = #tpu.dot_dimension_numbers<[1], [0], [0], [1], [0, 0, 1, 1], [], []>} : vector<8x4xf32>, vector<4x256xf32>, vector<8x256xf32> -> vector<8x256xf32>
    %129 = arith.addf %124, %128 : vector<8x256xf32>
    %c239_i32_75 = arith.constant 239 : i32
    %130 = tpu.dynamic_rotate %91 by %c239_i32_75 dim 1 : vector<4x256xf32>, i32 -> vector<4x256xf32>
    %131 = vector.broadcast %27 : vector<1x256xf32> to vector<4x256xf32>
    %132 = arith.mulf %130, %131 : vector<4x256xf32>
    %cst_76 = arith.constant dense<0.000000e+00> : vector<8x256xf32>
    %133 = tpu.matmul %18, %132, %cst_76 {dimension_numbers = #tpu.dot_dimension_numbers<[1], [0], [0], [1], [0, 0, 1, 1], [], []>} : vector<8x4xf32>, vector<4x256xf32>, vector<8x256xf32> -> vector<8x256xf32>
    %134 = arith.addf %129, %133 : vector<8x256xf32>
    %135 = vector.broadcast %0 : vector<8x1xf32> to vector<8x256xf32>
    %136 = arith.addf %134, %135 : vector<8x256xf32>
    %cst_77 = arith.constant 0.000000e+00 : f32
    %137 = vector.broadcast %cst_77 : f32 to vector<8x256xf32>
    %138 = arith.minimumf %136, %137 : vector<8x256xf32>
    %139 = math.exp %138 : vector<8x256xf32>
    %cst_78 = arith.constant 1.000000e+00 : f32
    %140 = vector.broadcast %cst_78 : f32 to vector<8x256xf32>
    %141 = arith.subf %139, %140 : vector<8x256xf32>
    %cst_79 = arith.constant 1.67326319 : f32
    %142 = vector.broadcast %cst_79 : f32 to vector<8x256xf32>
    %143 = arith.mulf %142, %141 : vector<8x256xf32>
    %cst_80 = arith.constant 0.000000e+00 : f32
    %144 = vector.broadcast %cst_80 : f32 to vector<8x256xf32>
    %145 = arith.cmpf ogt, %136, %144 : vector<8x256xf32>
    %146 = arith.select %145, %136, %143 : vector<8x256xi1>, vector<8x256xf32>
    %cst_81 = arith.constant 1.05070102 : f32
    %147 = vector.broadcast %cst_81 : f32 to vector<8x256xf32>
    %148 = arith.mulf %147, %146 : vector<8x256xf32>
    %c1_82 = arith.constant 1 : index
    %c0_83 = arith.constant 0 : index
    %c0_84 = arith.constant 0 : index
    %149 = vector.load %arg5[%c1_82, %c0_83, %c0_84] : memref<2x8x256xf32, #tpu.memory_space<vmem>>, vector<1x8x256xf32>
    %150 = vector.shape_cast %149 : vector<1x8x256xf32> to vector<8x256xf32>
    %151 = vector.shape_cast %148 : vector<8x256xf32> to vector<1x8x256xf32>
    tpu.vector_store %arg5[%c1_82, %c0_83, %c0_84], %151 {strides = array<i32>} : memref<2x8x256xf32, #tpu.memory_space<vmem>>, vector<1x8x256xf32>,
    return
  }
  func.func @transform_0(%arg0: i32) -> (i32, i32, i32) {
    %c0_i32 = arith.constant 0 : i32
    %c0_i32_0 = arith.constant 0 : i32
    %c0_i32_1 = arith.constant 0 : i32
    %c0_i32_2 = arith.constant 0 : i32
    return %c0_i32, %c0_i32_0, %c0_i32_1 : i32, i32, i32
  }
  func.func @transform_1(%arg0: i32) -> (i32, i32) {
    %c0_i32 = arith.constant 0 : i32
    %c0_i32_0 = arith.constant 0 : i32
    %c0_i32_1 = arith.constant 0 : i32
    return %c0_i32, %c0_i32_0 : i32, i32
  }
  func.func @transform_2(%arg0: i32) -> (i32, i32) {
    %c0_i32 = arith.constant 0 : i32
    %c0_i32_0 = arith.constant 0 : i32
    %c0_i32_1 = arith.constant 0 : i32
    return %c0_i32, %c0_i32_0 : i32, i32
  }
  func.func @transform_3(%arg0: i32) -> (i32, i32, i32) {
    %c0_i32 = arith.constant 0 : i32
    %c0_i32_0 = arith.constant 0 : i32
    %c0_i32_1 = arith.constant 0 : i32
    return %arg0, %c0_i32, %c0_i32_0 : i32, i32, i32
  }
  func.func @transform_4(%arg0: i32) -> (i32, i32, i32) {
    %c0_i32 = arith.constant 0 : i32
    %c0_i32_0 = arith.constant 0 : i32
    %c0_i32_1 = arith.constant 0 : i32
    return %arg0, %c0_i32, %c0_i32_0 : i32, i32, i32
  }
}

</mosaic_0001>

<llo_original>
// kernel: tpu_custom_call.1
$region0: #{tpu_custom_call.1}
  #allocation0 [shape = 'u32[]', space=smem, size = 0x4, offset = 0x4, fixed_abs, tag = 'smem constant byte address 0x4 - core index']
  #allocation1 [shape = 'u32[72,128]{1,0:T(1,128)}', space=vmem, size = 0x9000, scoped, tag = 'internal scratch']
  %s0 = inlined_call_operand.vmem [shape: f32[9,8,4], index: 0, kind: input, shape index: {}]
  %s1 = inlined_call_operand.vmem [shape: f32[8,1], index: 1, kind: input, shape index: {}]
  %s2 = inlined_call_operand.vmem [shape: f32[9,256], index: 2, kind: input, shape index: {}]
  %s3 = inlined_call_operand.vmem [shape: f32[2,4,256], index: 3, kind: input, shape index: {}]
  %s4 = inlined_call_operand.hbm [shape: f32[2,8,256], index: 4, kind: output, shape index: {}]
  %s5 = sld [smem:[#allocation0]]
  $region26: #{tpu_custom_call.1} parent=0
    _
  %s7 = ssub.s32 1, %s5
  %s8 = scalar_select 0, %s7, %s5
  $region1: #{tpu_custom_call.1} parent=0
    #allocation2 [shape = 'u8[16384]{0}', space=vmem, size = 0x4000, scoped, tag = 'output window, operand 0, single buffered']
    #allocation3 [shape = 's32[1]{0}', space=sflag, size = 0x4, scoped, tag = 'scoped memory for tpu_custom_call.1']
    %9 = vsyncpa [#allocation3], 0
    // Predicated region
    $region2: #{tpu_custom_call.1} parent=1 // pred_check
      _
    $region3: #{tpu_custom_call.1} parent=1 // pred_check_branch
      %11 = sbr.rel (0) target = $region5
    $region4: #{tpu_custom_call.1} parent=1 // pred_region
      _
    $region5: #{tpu_custom_call.1} parent=1 // pred_fallthru
      _
    // Predicated region
    $region6: #{tpu_custom_call.1} parent=1 // pred_check
      _
    $region7: #{tpu_custom_call.1} parent=1 // pred_check_branch
      %13 = sbr.rel (0) target = $region9
    $region8: #{tpu_custom_call.1} parent=1 // pred_region
      _
    $region9: #{tpu_custom_call.1} parent=1 // pred_fallthru
      _
    // Predicated region
    $region10: #{tpu_custom_call.1} parent=1 // pred_check
      _
    $region11: #{tpu_custom_call.1} parent=1 // pred_check_branch
      %15 = sbr.rel (0) target = $region13
    $region12: #{tpu_custom_call.1} parent=1 // pred_region
      _
    $region13: #{tpu_custom_call.1} parent=1 // pred_fallthru
      _
    // Predicated region
    $region14: #{tpu_custom_call.1} parent=1 // pred_check
      _
    $region15: #{tpu_custom_call.1} parent=1 // pred_check_branch
      %17 = sbr.rel (0) target = $region17
    $region16: #{tpu_custom_call.1} parent=1 // pred_region
      _
    $region17: #{tpu_custom_call.1} parent=1 // pred_fallthru
      _
    %v18 = vld [vmem:[%s1] sm:$0xff]
    %v19 = vld [vmem:[%s0] sm:$0xff]
    %s20 = scalar_lea.vmem %s0, 8
    %v21 = vld [vmem:[%s20] sm:$0xff]
    %s22 = scalar_lea.vmem %s0, 16
    %v23 = vld [vmem:[%s22] sm:$0xff]
    %s24 = scalar_lea.vmem %s0, 24
    %v25 = vld [vmem:[%s24] sm:$0xff]
    %s26 = scalar_lea.vmem %s0, 32
    %v27 = vld [vmem:[%s26] sm:$0xff]
    %s28 = scalar_lea.vmem %s0, 40
    %v29 = vld [vmem:[%s28] sm:$0xff]
    %s30 = scalar_lea.vmem %s0, 48
    %v31 = vld [vmem:[%s30] sm:$0xff]
    %s32 = scalar_lea.vmem %s0, 56
    %v33 = vld [vmem:[%s32] sm:$0xff]
    %s34 = scalar_lea.vmem %s0, 64
    %v35 = vld [vmem:[%s34] sm:$0xff]
    %v36 = vld [vmem:[%s2] ss:$8 sm:$0x3]
    %s37 = scalar_lea.vmem %s2, 1
    %v38 = vld [vmem:[%s37] ss:$8 sm:$0x3]
    %s39 = scalar_lea.vmem %s2, 2
    %v40 = vld [vmem:[%s39] ss:$8 sm:$0x3]
    %s41 = scalar_lea.vmem %s2, 3
    %v42 = vld [vmem:[%s41] ss:$8 sm:$0x3]
    %s43 = scalar_lea.vmem %s2, 4
    %v44 = vld [vmem:[%s43] ss:$8 sm:$0x3]
    %s45 = scalar_lea.vmem %s2, 5
    %v46 = vld [vmem:[%s45] ss:$8 sm:$0x3]
    %s47 = scalar_lea.vmem %s2, 6
    %v48 = vld [vmem:[%s47] ss:$8 sm:$0x3]
    %s49 = scalar_lea.vmem %s2, 7
    %v50 = vld [vmem:[%s49] ss:$8 sm:$0x3]
    %s51 = scalar_lea.vmem %s2, 16
    %v52 = vld [vmem:[%s51] ss:$8 sm:$0x3]
    %v53 = vld [vmem:[%s3] sm:$0xff]
    %55 = vst [vmem:[#allocation1] ss:$2 sm:$0xff] %v53
    %v56 = vld.sshfl [vmem:[#allocation1] sm:$0xff pattern:$0x75316420]
    %v57 = vld.sshfl [vmem:[#allocation1 + $0x8] sm:$0xff pattern:$0x75316420]
    %60 = vrot.lane.b32.xlu0 %v56, 17
    %v61 = vpop.permute.xlu0 %60
    %62 = vrot.lane.b32.xlu0 %v57, 17
    %v63 = vpop.permute.xlu0 %62
    %v64 = vlaneseq
    %v65 = vand.u32 %v64, 127
    %vm66 = vcmp.lt.s32.totalorder %v65, 17
    %v67 = vsel %vm66, %v61, %v63
    %v68 = vsel %vm66, %v63, %v61
    %v70 = vperm.slane %v36, 0
    %v71 = vperm.slane %v36, 1
    %v74 = vmul.f32 %v68, %v70
    %v75 = vmul.f32 %v67, %v71
    %76 = vst [vmem:[#allocation1] ss:$2 sm:$0xff] %v53
    %v77 = vld.sshfl [vmem:[#allocation1] sm:$0xff pattern:$0x75316420]
    %v78 = vld.sshfl [vmem:[#allocation1 + $0x8] sm:$0xff pattern:$0x75316420]
    %81 = vrot.lane.b32.xlu0 %v77, 16
    %v82 = vpop.permute.xlu0 %81
    %83 = vrot.lane.b32.xlu0 %v78, 16
    %v84 = vpop.permute.xlu0 %83
    %vm85 = vcmp.lt.s32.totalorder %v65, 16
    %v86 = vsel %vm85, %v82, %v84
    %v87 = vsel %vm85, %v84, %v82
    %v89 = vperm.slane %v38, 0
    %v90 = vperm.slane %v38, 1
    %v93 = vmul.f32 %v87, %v89
    %v94 = vmul.f32 %v86, %v90
    %vm95 = vcmask 31744
    %v97 = vsel %vm95, %v21, 0
    %vm99 = vcmask 1043456
    %v101 = vsel %vm99, %v93, 0
    %v104 = vsel %vm99, %v94, 0
    %106 = vmatpush.msra.mxu0 0.0
    %107 = vmatpush.msra.mxu0 0.0
    %108 = vmatpush.msra.mxu0 0.0
    %109 = vmatpush.msra.mxu0 0.0
    %110 = vmatpush.msra.mxu0 0.0
    %111 = vmatpush.msra.mxu0 0.0
    %112 = vmatpush.msra.mxu0 0.0
    %113 = vmatpush.msra.mxu0 0.0
    %114 = vmatpush.msra.mxu0 0.0
    %115 = vmatpush.msra.mxu0 0.0
    %116 = vmatpush.msra.mxu0 0.0
    %117 = vmatpush.msra.mxu0 0.0
    %118 = vmatpush.msra.mxu0 0.0
    %119 = vmatpush.msra.mxu0 0.0
    %120 = vmatpush.msra.mxu0 0.0
    %121 = vmatpush.msra.mxu0 %v101
    %122 = vmatmul.f32.gmra.mxu0 %v97
    %v123 = vpop.f32.mrf.mxu0
    %v124 = vadd.f32 0.0, %v123
    %125 = vdwg.mxu0
    %126 = vmatpush.msra.mxu0 0.0
    %127 = vmatpush.msra.mxu0 0.0
    %128 = vmatpush.msra.mxu0 0.0
    %129 = vmatpush.msra.mxu0 0.0
    %130 = vmatpush.msra.mxu0 0.0
    %131 = vmatpush.msra.mxu0 0.0
    %132 = vmatpush.msra.mxu0 0.0
    %133 = vmatpush.msra.mxu0 0.0
    %134 = vmatpush.msra.mxu0 0.0
    %135 = vmatpush.msra.mxu0 0.0
    %136 = vmatpush.msra.mxu0 0.0
    %137 = vmatpush.msra.mxu0 0.0
    %138 = vmatpush.msra.mxu0 0.0
    %139 = vmatpush.msra.mxu0 0.0
    %140 = vmatpush.msra.mxu0 0.0
    %141 = vmatpush.msra.mxu0 %v104
    %142 = vmatmul.f32.gmra.mxu0 %v97
    %v143 = vpop.f32.mrf.mxu0
    %v144 = vadd.f32 0.0, %v143
    %145 = vdwg.mxu0
    %v147 = vsel %vm95, %v19, 0
    %v150 = vsel %vm99, %v74, 0
    %v153 = vsel %vm99, %v75, 0
    %155 = vmatpush.msra.mxu0 0.0
    %156 = vmatpush.msra.mxu0 0.0
    %157 = vmatpush.msra.mxu0 0.0
    %158 = vmatpush.msra.mxu0 0.0
    %159 = vmatpush.msra.mxu0 0.0
    %160 = vmatpush.msra.mxu0 0.0
    %161 = vmatpush.msra.mxu0 0.0
    %162 = vmatpush.msra.mxu0 0.0
    %163 = vmatpush.msra.mxu0 0.0
    %164 = vmatpush.msra.mxu0 0.0
    %165 = vmatpush.msra.mxu0 0.0
    %166 = vmatpush.msra.mxu0 0.0
    %167 = vmatpush.msra.mxu0 0.0
    %168 = vmatpush.msra.mxu0 0.0
    %169 = vmatpush.msra.mxu0 0.0
    %170 = vmatpush.msra.mxu0 %v150
    %171 = vmatmul.f32.gmra.mxu0 %v147
    %v172 = vpop.f32.mrf.mxu0
    %v173 = vadd.f32 %v124, %v172
    %174 = vdwg.mxu0
    %175 = vmatpush.msra.mxu0 0.0
    %176 = vmatpush.msra.mxu0 0.0
    %177 = vmatpush.msra.mxu0 0.0
    %178 = vmatpush.msra.mxu0 0.0
    %179 = vmatpush.msra.mxu0 0.0
    %180 = vmatpush.msra.mxu0 0.0
    %181 = vmatpush.msra.mxu0 0.0
    %182 = vmatpush.msra.mxu0 0.0
    %183 = vmatpush.msra.mxu0 0.0
    %184 = vmatpush.msra.mxu0 0.0
    %185 = vmatpush.msra.mxu0 0.0
    %186 = vmatpush.msra.mxu0 0.0
    %187 = vmatpush.msra.mxu0 0.0
    %188 = vmatpush.msra.mxu0 0.0
    %189 = vmatpush.msra.mxu0 0.0
    %190 = vmatpush.msra.mxu0 %v153
    %191 = vmatmul.f32.gmra.mxu0 %v147
    %v192 = vpop.f32.mrf.mxu0
    %v193 = vadd.f32 %v144, %v192
    %194 = vdwg.mxu0
    %195 = vst [vmem:[#allocation1] ss:$2 sm:$0xff] %v53
    %v196 = vld.sshfl [vmem:[#allocation1] sm:$0xff pattern:$0x75316420]
    %v197 = vld.sshfl [vmem:[#allocation1 + $0x8] sm:$0xff pattern:$0x75316420]
    %200 = vrot.lane.b32.xlu0 %v196, 15
    %v201 = vpop.permute.xlu0 %200
    %202 = vrot.lane.b32.xlu0 %v197, 15
    %v203 = vpop.permute.xlu0 %202
    %vm204 = vcmp.lt.s32.totalorder %v65, 15
    %v205 = vsel %vm204, %v201, %v203
    %v206 = vsel %vm204, %v203, %v201
    %v208 = vperm.slane %v40, 0
    %v209 = vperm.slane %v40, 1
    %v212 = vmul.f32 %v206, %v208
    %v213 = vmul.f32 %v205, %v209
    %v215 = vsel %vm95, %v23, 0
    %v218 = vsel %vm99, %v212, 0
    %v221 = vsel %vm99, %v213, 0
    %223 = vmatpush.msra.mxu0 0.0
    %224 = vmatpush.msra.mxu0 0.0
    %225 = vmatpush.msra.mxu0 0.0
    %226 = vmatpush.msra.mxu0 0.0
    %227 = vmatpush.msra.mxu0 0.0
    %228 = vmatpush.msra.mxu0 0.0
    %229 = vmatpush.msra.mxu0 0.0
    %230 = vmatpush.msra.mxu0 0.0
    %231 = vmatpush.msra.mxu0 0.0
    %232 = vmatpush.msra.mxu0 0.0
    %233 = vmatpush.msra.mxu0 0.0
    %234 = vmatpush.msra.mxu0 0.0
    %235 = vmatpush.msra.mxu0 0.0
    %236 = vmatpush.msra.mxu0 0.0
    %237 = vmatpush.msra.mxu0 0.0
    %238 = vmatpush.msra.mxu0 %v218
    %239 = vmatmul.f32.gmra.mxu0 %v215
    %v240 = vpop.f32.mrf.mxu0
    %v241 = vadd.f32 0.0, %v240
    %242 = vdwg.mxu0
    %243 = vmatpush.msra.mxu0 0.0
    %244 = vmatpush.msra.mxu0 0.0
    %245 = vmatpush.msra.mxu0 0.0
    %246 = vmatpush.msra.mxu0 0.0
    %247 = vmatpush.msra.mxu0 0.0
    %248 = vmatpush.msra.mxu0 0.0
    %249 = vmatpush.msra.mxu0 0.0
    %250 = vmatpush.msra.mxu0 0.0
    %251 = vmatpush.msra.mxu0 0.0
    %252 = vmatpush.msra.mxu0 0.0
    %253 = vmatpush.msra.mxu0 0.0
    %254 = vmatpush.msra.mxu0 0.0
    %255 = vmatpush.msra.mxu0 0.0
    %256 = vmatpush.msra.mxu0 0.0
    %257 = vmatpush.msra.mxu0 0.0
    %258 = vmatpush.msra.mxu0 %v221
    %259 = vmatmul.f32.gmra.mxu0 %v215
    %v260 = vpop.f32.mrf.mxu0
    %v261 = vadd.f32 0.0, %v260
    %262 = vdwg.mxu0
    %v263 = vadd.f32 %v173, %v241
    %v264 = vadd.f32 %v193, %v261
    %265 = vst [vmem:[#allocation1] ss:$2 sm:$0xff] %v53
    %v266 = vld.sshfl [vmem:[#allocation1] sm:$0xff pattern:$0x75316420]
    %v267 = vld.sshfl [vmem:[#allocation1 + $0x8] sm:$0xff pattern:$0x75316420]
    %270 = vrot.lane.b32.xlu0 %v266, 1
    %v271 = vpop.permute.xlu0 %270
    %272 = vrot.lane.b32.xlu0 %v267, 1
    %v273 = vpop.permute.xlu0 %272
    %vm274 = vcmp.lt.s32.totalorder %v65, 1
    %v275 = vsel %vm274, %v271, %v273
    %v276 = vsel %vm274, %v273, %v271
    %v278 = vperm.slane %v42, 0
    %v279 = vperm.slane %v42, 1
    %v282 = vmul.f32 %v276, %v278
    %v283 = vmul.f32 %v275, %v279
    %v285 = vsel %vm95, %v25, 0
    %v288 = vsel %vm99, %v282, 0
    %v291 = vsel %vm99, %v283, 0
    %293 = vmatpush.msra.mxu0 0.0
    %294 = vmatpush.msra.mxu0 0.0
    %295 = vmatpush.msra.mxu0 0.0
    %296 = vmatpush.msra.mxu0 0.0
    %297 = vmatpush.msra.mxu0 0.0
    %298 = vmatpush.msra.mxu0 0.0
    %299 = vmatpush.msra.mxu0 0.0
    %300 = vmatpush.msra.mxu0 0.0
    %301 = vmatpush.msra.mxu0 0.0
    %302 = vmatpush.msra.mxu0 0.0
    %303 = vmatpush.msra.mxu0 0.0
    %304 = vmatpush.msra.mxu0 0.0
    %305 = vmatpush.msra.mxu0 0.0
    %306 = vmatpush.msra.mxu0 0.0
    %307 = vmatpush.msra.mxu0 0.0
    %308 = vmatpush.msra.mxu0 %v288
    %309 = vmatmul.f32.gmra.mxu0 %v285
    %v310 = vpop.f32.mrf.mxu0
    %v311 = vadd.f32 0.0, %v310
    %312 = vdwg.mxu0
    %313 = vmatpush.msra.mxu0 0.0
    %314 = vmatpush.msra.mxu0 0.0
    %315 = vmatpush.msra.mxu0 0.0
    %316 = vmatpush.msra.mxu0 0.0
    %317 = vmatpush.msra.mxu0 0.0
    %318 = vmatpush.msra.mxu0 0.0
    %319 = vmatpush.msra.mxu0 0.0
    %320 = vmatpush.msra.mxu0 0.0
    %321 = vmatpush.msra.mxu0 0.0
    %322 = vmatpush.msra.mxu0 0.0
    %323 = vmatpush.msra.mxu0 0.0
    %324 = vmatpush.msra.mxu0 0.0
    %325 = vmatpush.msra.mxu0 0.0
    %326 = vmatpush.msra.mxu0 0.0
    %327 = vmatpush.msra.mxu0 0.0
    %328 = vmatpush.msra.mxu0 %v291
    %329 = vmatmul.f32.gmra.mxu0 %v285
    %v330 = vpop.f32.mrf.mxu0
    %v331 = vadd.f32 0.0, %v330
    %332 = vdwg.mxu0
    %v333 = vadd.f32 %v263, %v311
    %v334 = vadd.f32 %v264, %v331
    %v336 = vperm.slane %v44, 0
    %v337 = vperm.slane %v44, 1
    %v338 = vrot.slane %v337, 4
    %v339 = vsel %vm99, %v336, %v338
    %v341 = vmul.f32 %v53, %v339
    %343 = vst [vmem:[#allocation1] ss:$2 sm:$0xff] %v341
    %v344 = vld.sshfl [vmem:[#allocation1] sm:$0xff pattern:$0x75316420]
    %v345 = vld.sshfl [vmem:[#allocation1 + $0x8] sm:$0xff pattern:$0x75316420]
    %v347 = vsel %vm95, %v27, 0
    %v349 = vsel %vm99, %v344, 0
    %v351 = vsel %vm99, %v345, 0
    %353 = vmatpush.msra.mxu0 0.0
    %354 = vmatpush.msra.mxu0 0.0
    %355 = vmatpush.msra.mxu0 0.0
    %356 = vmatpush.msra.mxu0 0.0
    %357 = vmatpush.msra.mxu0 0.0
    %358 = vmatpush.msra.mxu0 0.0
    %359 = vmatpush.msra.mxu0 0.0
    %360 = vmatpush.msra.mxu0 0.0
    %361 = vmatpush.msra.mxu0 0.0
    %362 = vmatpush.msra.mxu0 0.0
    %363 = vmatpush.msra.mxu0 0.0
    %364 = vmatpush.msra.mxu0 0.0
    %365 = vmatpush.msra.mxu0 0.0
    %366 = vmatpush.msra.mxu0 0.0
    %367 = vmatpush.msra.mxu0 0.0
    %368 = vmatpush.msra.mxu0 %v349
    %369 = vmatmul.f32.gmra.mxu0 %v347
    %v370 = vpop.f32.mrf.mxu0
    %v371 = vadd.f32 0.0, %v370
    %372 = vdwg.mxu0
    %373 = vmatpush.msra.mxu0 0.0
    %374 = vmatpush.msra.mxu0 0.0
    %375 = vmatpush.msra.mxu0 0.0
    %376 = vmatpush.msra.mxu0 0.0
    %377 = vmatpush.msra.mxu0 0.0
    %378 = vmatpush.msra.mxu0 0.0
    %379 = vmatpush.msra.mxu0 0.0
    %380 = vmatpush.msra.mxu0 0.0
    %381 = vmatpush.msra.mxu0 0.0
    %382 = vmatpush.msra.mxu0 0.0
    %383 = vmatpush.msra.mxu0 0.0
    %384 = vmatpush.msra.mxu0 0.0
    %385 = vmatpush.msra.mxu0 0.0
    %386 = vmatpush.msra.mxu0 0.0
    %387 = vmatpush.msra.mxu0 0.0
    %388 = vmatpush.msra.mxu0 %v351
    %389 = vmatmul.f32.gmra.mxu0 %v347
    %v390 = vpop.f32.mrf.mxu0
    %v391 = vadd.f32 0.0, %v390
    %392 = vdwg.mxu0
    %v393 = vadd.f32 %v333, %v371
    %v394 = vadd.f32 %v334, %v391
    %395 = vst [vmem:[#allocation1] ss:$2 sm:$0xff] %v53
    %v396 = vld.sshfl [vmem:[#allocation1] sm:$0xff pattern:$0x75316420]
    %v397 = vld.sshfl [vmem:[#allocation1 + $0x8] sm:$0xff pattern:$0x75316420]
    %400 = vrot.lane.b32.xlu0 %v396, 127
    %v401 = vpop.permute.xlu0 %400
    %402 = vrot.lane.b32.xlu0 %v397, 127
    %v403 = vpop.permute.xlu0 %402
    %vm404 = vcmp.lt.s32.totalorder %v65, 127
    %v405 = vsel %vm404, %v401, %v403
    %v406 = vsel %vm404, %v403, %v401
    %v408 = vperm.slane %v46, 0
    %v409 = vperm.slane %v46, 1
    %v412 = vmul.f32 %v405, %v408
    %v413 = vmul.f32 %v406, %v409
    %v415 = vsel %vm95, %v29, 0
    %v418 = vsel %vm99, %v412, 0
    %v421 = vsel %vm99, %v413, 0
    %423 = vmatpush.msra.mxu0 0.0
    %424 = vmatpush.msra.mxu0 0.0
    %425 = vmatpush.msra.mxu0 0.0
    %426 = vmatpush.msra.mxu0 0.0
    %427 = vmatpush.msra.mxu0 0.0
    %428 = vmatpush.msra.mxu0 0.0
    %429 = vmatpush.msra.mxu0 0.0
    %430 = vmatpush.msra.mxu0 0.0
    %431 = vmatpush.msra.mxu0 0.0
    %432 = vmatpush.msra.mxu0 0.0
    %433 = vmatpush.msra.mxu0 0.0
    %434 = vmatpush.msra.mxu0 0.0
    %435 = vmatpush.msra.mxu0 0.0
    %436 = vmatpush.msra.mxu0 0.0
    %437 = vmatpush.msra.mxu0 0.0
    %438 = vmatpush.msra.mxu0 %v418
    %439 = vmatmul.f32.gmra.mxu0 %v415
    %v440 = vpop.f32.mrf.mxu0
    %v441 = vadd.f32 0.0, %v440
    %442 = vdwg.mxu0
    %443 = vmatpush.msra.mxu0 0.0
    %444 = vmatpush.msra.mxu0 0.0
    %445 = vmatpush.msra.mxu0 0.0
    %446 = vmatpush.msra.mxu0 0.0
    %447 = vmatpush.msra.mxu0 0.0
    %448 = vmatpush.msra.mxu0 0.0
    %449 = vmatpush.msra.mxu0 0.0
    %450 = vmatpush.msra.mxu0 0.0
    %451 = vmatpush.msra.mxu0 0.0
    %452 = vmatpush.msra.mxu0 0.0
    %453 = vmatpush.msra.mxu0 0.0
    %454 = vmatpush.msra.mxu0 0.0
    %455 = vmatpush.msra.mxu0 0.0
    %456 = vmatpush.msra.mxu0 0.0
    %457 = vmatpush.msra.mxu0 0.0
    %458 = vmatpush.msra.mxu0 %v421
    %459 = vmatmul.f32.gmra.mxu0 %v415
    %v460 = vpop.f32.mrf.mxu0
    %v461 = vadd.f32 0.0, %v460
    %462 = vdwg.mxu0
    %v463 = vadd.f32 %v393, %v441
    %v464 = vadd.f32 %v394, %v461
    %465 = vst [vmem:[#allocation1] ss:$2 sm:$0xff] %v53
    %v466 = vld.sshfl [vmem:[#allocation1] sm:$0xff pattern:$0x75316420]
    %v467 = vld.sshfl [vmem:[#allocation1 + $0x8] sm:$0xff pattern:$0x75316420]
    %470 = vrot.lane.b32.xlu0 %v466, 113
    %v471 = vpop.permute.xlu0 %470
    %472 = vrot.lane.b32.xlu0 %v467, 113
    %v473 = vpop.permute.xlu0 %472
    %vm474 = vcmp.lt.s32.totalorder %v65, 113
    %v475 = vsel %vm474, %v471, %v473
    %v476 = vsel %vm474, %v473, %v471
    %v478 = vperm.slane %v48, 0
    %v479 = vperm.slane %v48, 1
    %v482 = vmul.f32 %v475, %v478
    %v483 = vmul.f32 %v476, %v479
    %v485 = vsel %vm95, %v31, 0
    %v488 = vsel %vm99, %v482, 0
    %v491 = vsel %vm99, %v483, 0
    %493 = vmatpush.msra.mxu0 0.0
    %494 = vmatpush.msra.mxu0 0.0
    %495 = vmatpush.msra.mxu0 0.0
    %496 = vmatpush.msra.mxu0 0.0
    %497 = vmatpush.msra.mxu0 0.0
    %498 = vmatpush.msra.mxu0 0.0
    %499 = vmatpush.msra.mxu0 0.0
    %500 = vmatpush.msra.mxu0 0.0
    %501 = vmatpush.msra.mxu0 0.0
    %502 = vmatpush.msra.mxu0 0.0
    %503 = vmatpush.msra.mxu0 0.0
    %504 = vmatpush.msra.mxu0 0.0
    %505 = vmatpush.msra.mxu0 0.0
    %506 = vmatpush.msra.mxu0 0.0
    %507 = vmatpush.msra.mxu0 0.0
    %508 = vmatpush.msra.mxu0 %v488
    %509 = vmatmul.f32.gmra.mxu0 %v485
    %v510 = vpop.f32.mrf.mxu0
    %v511 = vadd.f32 0.0, %v510
    %512 = vdwg.mxu0
    %513 = vmatpush.msra.mxu0 0.0
    %514 = vmatpush.msra.mxu0 0.0
    %515 = vmatpush.msra.mxu0 0.0
    %516 = vmatpush.msra.mxu0 0.0
    %517 = vmatpush.msra.mxu0 0.0
    %518 = vmatpush.msra.mxu0 0.0
    %519 = vmatpush.msra.mxu0 0.0
    %520 = vmatpush.msra.mxu0 0.0
    %521 = vmatpush.msra.mxu0 0.0
    %522 = vmatpush.msra.mxu0 0.0
    %523 = vmatpush.msra.mxu0 0.0
    %524 = vmatpush.msra.mxu0 0.0
    %525 = vmatpush.msra.mxu0 0.0
    %526 = vmatpush.msra.mxu0 0.0
    %527 = vmatpush.msra.mxu0 0.0
    %528 = vmatpush.msra.mxu0 %v491
    %529 = vmatmul.f32.gmra.mxu0 %v485
    %v530 = vpop.f32.mrf.mxu0
    %v531 = vadd.f32 0.0, %v530
    %532 = vdwg.mxu0
    %v533 = vadd.f32 %v463, %v511
    %v534 = vadd.f32 %v464, %v531
    %535 = vst [vmem:[#allocation1] ss:$2 sm:$0xff] %v53
    %v536 = vld.sshfl [vmem:[#allocation1] sm:$0xff pattern:$0x75316420]
    %v537 = vld.sshfl [vmem:[#allocation1 + $0x8] sm:$0xff pattern:$0x75316420]
    %540 = vrot.lane.b32.xlu0 %v536, 112
    %v541 = vpop.permute.xlu0 %540
    %542 = vrot.lane.b32.xlu0 %v537, 112
    %v543 = vpop.permute.xlu0 %542
    %vm544 = vcmp.lt.s32.totalorder %v65, 112
    %v545 = vsel %vm544, %v541, %v543
    %v546 = vsel %vm544, %v543, %v541
    %v548 = vperm.slane %v50, 0
    %v549 = vperm.slane %v50, 1
    %v552 = vmul.f32 %v545, %v548
    %v553 = vmul.f32 %v546, %v549
    %v555 = vsel %vm95, %v33, 0
    %v558 = vsel %vm99, %v552, 0
    %v561 = vsel %vm99, %v553, 0
    %563 = vmatpush.msra.mxu0 0.0
    %564 = vmatpush.msra.mxu0 0.0
    %565 = vmatpush.msra.mxu0 0.0
    %566 = vmatpush.msra.mxu0 0.0
    %567 = vmatpush.msra.mxu0 0.0
    %568 = vmatpush.msra.mxu0 0.0
    %569 = vmatpush.msra.mxu0 0.0
    %570 = vmatpush.msra.mxu0 0.0
    %571 = vmatpush.msra.mxu0 0.0
    %572 = vmatpush.msra.mxu0 0.0
    %573 = vmatpush.msra.mxu0 0.0
    %574 = vmatpush.msra.mxu0 0.0
    %575 = vmatpush.msra.mxu0 0.0
    %576 = vmatpush.msra.mxu0 0.0
    %577 = vmatpush.msra.mxu0 0.0
    %578 = vmatpush.msra.mxu0 %v558
    %579 = vmatmul.f32.gmra.mxu0 %v555
    %v580 = vpop.f32.mrf.mxu0
    %v581 = vadd.f32 0.0, %v580
    %582 = vdwg.mxu0
    %583 = vmatpush.msra.mxu0 0.0
    %584 = vmatpush.msra.mxu0 0.0
    %585 = vmatpush.msra.mxu0 0.0
    %586 = vmatpush.msra.mxu0 0.0
    %587 = vmatpush.msra.mxu0 0.0
    %588 = vmatpush.msra.mxu0 0.0
    %589 = vmatpush.msra.mxu0 0.0
    %590 = vmatpush.msra.mxu0 0.0
    %591 = vmatpush.msra.mxu0 0.0
    %592 = vmatpush.msra.mxu0 0.0
    %593 = vmatpush.msra.mxu0 0.0
    %594 = vmatpush.msra.mxu0 0.0
    %595 = vmatpush.msra.mxu0 0.0
    %596 = vmatpush.msra.mxu0 0.0
    %597 = vmatpush.msra.mxu0 0.0
    %598 = vmatpush.msra.mxu0 %v561
    %599 = vmatmul.f32.gmra.mxu0 %v555
    %v600 = vpop.f32.mrf.mxu0
    %v601 = vadd.f32 0.0, %v600
    %602 = vdwg.mxu0
    %v603 = vadd.f32 %v533, %v581
    %v604 = vadd.f32 %v534, %v601
    %605 = vst [vmem:[#allocation1] ss:$2 sm:$0xff] %v53
    %v606 = vld.sshfl [vmem:[#allocation1] sm:$0xff pattern:$0x75316420]
    %v607 = vld.sshfl [vmem:[#allocation1 + $0x8] sm:$0xff pattern:$0x75316420]
    %610 = vrot.lane.b32.xlu0 %v606, 111
    %v611 = vpop.permute.xlu0 %610
    %612 = vrot.lane.b32.xlu0 %v607, 111
    %v613 = vpop.permute.xlu0 %612
    %vm614 = vcmp.lt.s32.totalorder %v65, 111
    %v615 = vsel %vm614, %v611, %v613
    %v616 = vsel %vm614, %v613, %v611
    %v618 = vperm.slane %v52, 0
    %v619 = vperm.slane %v52, 1
    %v622 = vmul.f32 %v615, %v618
    %v623 = vmul.f32 %v616, %v619
    %v625 = vsel %vm95, %v35, 0
    %v628 = vsel %vm99, %v622, 0
    %v631 = vsel %vm99, %v623, 0
    %633 = vmatpush.msra.mxu0 0.0
    %634 = vmatpush.msra.mxu0 0.0
    %635 = vmatpush.msra.mxu0 0.0
    %636 = vmatpush.msra.mxu0 0.0
    %637 = vmatpush.msra.mxu0 0.0
    %638 = vmatpush.msra.mxu0 0.0
    %639 = vmatpush.msra.mxu0 0.0
    %640 = vmatpush.msra.mxu0 0.0
    %641 = vmatpush.msra.mxu0 0.0
    %642 = vmatpush.msra.mxu0 0.0
    %643 = vmatpush.msra.mxu0 0.0
    %644 = vmatpush.msra.mxu0 0.0
    %645 = vmatpush.msra.mxu0 0.0
    %646 = vmatpush.msra.mxu0 0.0
    %647 = vmatpush.msra.mxu0 0.0
    %648 = vmatpush.msra.mxu0 %v628
    %649 = vmatmul.f32.gmra.mxu0 %v625
    %v650 = vpop.f32.mrf.mxu0
    %v651 = vadd.f32 0.0, %v650
    %652 = vdwg.mxu0
    %653 = vmatpush.msra.mxu0 0.0
    %654 = vmatpush.msra.mxu0 0.0
    %655 = vmatpush.msra.mxu0 0.0
    %656 = vmatpush.msra.mxu0 0.0
    %657 = vmatpush.msra.mxu0 0.0
    %658 = vmatpush.msra.mxu0 0.0
    %659 = vmatpush.msra.mxu0 0.0
    %660 = vmatpush.msra.mxu0 0.0
    %661 = vmatpush.msra.mxu0 0.0
    %662 = vmatpush.msra.mxu0 0.0
    %663 = vmatpush.msra.mxu0 0.0
    %664 = vmatpush.msra.mxu0 0.0
    %665 = vmatpush.msra.mxu0 0.0
    %666 = vmatpush.msra.mxu0 0.0
    %667 = vmatpush.msra.mxu0 0.0
    %668 = vmatpush.msra.mxu0 %v631
    %669 = vmatmul.f32.gmra.mxu0 %v625
    %v670 = vpop.f32.mrf.mxu0
    %v671 = vadd.f32 0.0, %v670
    %672 = vdwg.mxu0
    %v673 = vadd.f32 %v603, %v651
    %v674 = vadd.f32 %v604, %v671
    %676 = vset.pattern.permute.xlu0 0
    %677 = vperm.xlu0 %676, %v18
    %v678 = vpop.permute.xlu0 %677
    %v680 = vadd.f32 %v673, %v678
    %v681 = vadd.f32 %v674, %v678
    %v682 = vmin.f32 %v680, 0.0
    %v683 = vmin.f32 %v681, 0.0
    %v684 = vmul.f32 %v682, 1.442695
    %v685 = vpow.pop %v684
    %v686 = vmul.f32 %v683, 1.442695
    %v687 = vpow.pop %v686
    %v688 = vsub.f32 %v685, 1.0
    %v689 = vsub.f32 %v687, 1.0
    %v690 = vmul.f32 %v688, 1.6732632
    %v691 = vmul.f32 %v689, 1.6732632
    %vm692 = vcmp.gt.f32.partialorder %v680, 0.0
    %vm693 = vcmp.gt.f32.partialorder %v681, 0.0
    %v694 = vsel %vm692, %v680, %v690
    %v695 = vsel %vm693, %v681, %v691
    %v696 = vmul.f32 %v694, 1.050701
    %v697 = vmul.f32 %v695, 1.050701
    %698 = vst [vmem:[#allocation2] sm:$0xff] %v696
    %699 = vst [vmem:[#allocation2 + $0x8] sm:$0xff] %v697
    %s700 = scalar_lea.vmem %s3, 8
    %v701 = vld [vmem:[%s700] sm:$0xff]
    %703 = vst [vmem:[#allocation1] ss:$2 sm:$0xff] %v701
    %v704 = vld.sshfl [vmem:[#allocation1] sm:$0xff pattern:$0x75316420]
    %v705 = vld.sshfl [vmem:[#allocation1 + $0x8] sm:$0xff pattern:$0x75316420]
    %708 = vrot.lane.b32.xlu0 %v704, 17
    %v709 = vpop.permute.xlu0 %708
    %710 = vrot.lane.b32.xlu0 %v705, 17
    %v711 = vpop.permute.xlu0 %710
    %v712 = vsel %vm66, %v709, %v711
    %v713 = vsel %vm66, %v711, %v709
    %v714 = vmul.f32 %v713, %v70
    %v715 = vmul.f32 %v712, %v71
    %716 = vst [vmem:[#allocation1] ss:$2 sm:$0xff] %v701
    %v717 = vld.sshfl [vmem:[#allocation1] sm:$0xff pattern:$0x75316420]
    %v718 = vld.sshfl [vmem:[#allocation1 + $0x8] sm:$0xff pattern:$0x75316420]
    %721 = vrot.lane.b32.xlu0 %v717, 16
    %v722 = vpop.permute.xlu0 %721
    %723 = vrot.lane.b32.xlu0 %v718, 16
    %v724 = vpop.permute.xlu0 %723
    %v725 = vsel %vm85, %v722, %v724
    %v726 = vsel %vm85, %v724, %v722
    %v727 = vmul.f32 %v726, %v89
    %v728 = vmul.f32 %v725, %v90
    %v730 = vsel %vm99, %v727, 0
    %v733 = vsel %vm99, %v728, 0
    %735 = vmatpush.msra.mxu0 0.0
    %736 = vmatpush.msra.mxu0 0.0
    %737 = vmatpush.msra.mxu0 0.0
    %738 = vmatpush.msra.mxu0 0.0
    %739 = vmatpush.msra.mxu0 0.0
    %740 = vmatpush.msra.mxu0 0.0
    %741 = vmatpush.msra.mxu0 0.0
    %742 = vmatpush.msra.mxu0 0.0
    %743 = vmatpush.msra.mxu0 0.0
    %744 = vmatpush.msra.mxu0 0.0
    %745 = vmatpush.msra.mxu0 0.0
    %746 = vmatpush.msra.mxu0 0.0
    %747 = vmatpush.msra.mxu0 0.0
    %748 = vmatpush.msra.mxu0 0.0
    %749 = vmatpush.msra.mxu0 0.0
    %750 = vmatpush.msra.mxu0 %v730
    %751 = vmatmul.f32.gmra.mxu0 %v97
    %v752 = vpop.f32.mrf.mxu0
    %v753 = vadd.f32 0.0, %v752
    %754 = vdwg.mxu0
    %755 = vmatpush.msra.mxu0 0.0
    %756 = vmatpush.msra.mxu0 0.0
    %757 = vmatpush.msra.mxu0 0.0
    %758 = vmatpush.msra.mxu0 0.0
    %759 = vmatpush.msra.mxu0 0.0
    %760 = vmatpush.msra.mxu0 0.0
    %761 = vmatpush.msra.mxu0 0.0
    %762 = vmatpush.msra.mxu0 0.0
    %763 = vmatpush.msra.mxu0 0.0
    %764 = vmatpush.msra.mxu0 0.0
    %765 = vmatpush.msra.mxu0 0.0
    %766 = vmatpush.msra.mxu0 0.0
    %767 = vmatpush.msra.mxu0 0.0
    %768 = vmatpush.msra.mxu0 0.0
    %769 = vmatpush.msra.mxu0 0.0
    %770 = vmatpush.msra.mxu0 %v733
    %771 = vmatmul.f32.gmra.mxu0 %v97
    %v772 = vpop.f32.mrf.mxu0
    %v773 = vadd.f32 0.0, %v772
    %774 = vdwg.mxu0
    %v776 = vsel %vm99, %v714, 0
    %v779 = vsel %vm99, %v715, 0
    %781 = vmatpush.msra.mxu0 0.0
    %782 = vmatpush.msra.mxu0 0.0
    %783 = vmatpush.msra.mxu0 0.0
    %784 = vmatpush.msra.mxu0 0.0
    %785 = vmatpush.msra.mxu0 0.0
    %786 = vmatpush.msra.mxu0 0.0
    %787 = vmatpush.msra.mxu0 0.0
    %788 = vmatpush.msra.mxu0 0.0
    %789 = vmatpush.msra.mxu0 0.0
    %790 = vmatpush.msra.mxu0 0.0
    %791 = vmatpush.msra.mxu0 0.0
    %792 = vmatpush.msra.mxu0 0.0
    %793 = vmatpush.msra.mxu0 0.0
    %794 = vmatpush.msra.mxu0 0.0
    %795 = vmatpush.msra.mxu0 0.0
    %796 = vmatpush.msra.mxu0 %v776
    %797 = vmatmul.f32.gmra.mxu0 %v147
    %v798 = vpop.f32.mrf.mxu0
    %v799 = vadd.f32 %v753, %v798
    %800 = vdwg.mxu0
    %801 = vmatpush.msra.mxu0 0.0
    %802 = vmatpush.msra.mxu0 0.0
    %803 = vmatpush.msra.mxu0 0.0
    %804 = vmatpush.msra.mxu0 0.0
    %805 = vmatpush.msra.mxu0 0.0
    %806 = vmatpush.msra.mxu0 0.0
    %807 = vmatpush.msra.mxu0 0.0
    %808 = vmatpush.msra.mxu0 0.0
    %809 = vmatpush.msra.mxu0 0.0
    %810 = vmatpush.msra.mxu0 0.0
    %811 = vmatpush.msra.mxu0 0.0
    %812 = vmatpush.msra.mxu0 0.0
    %813 = vmatpush.msra.mxu0 0.0
    %814 = vmatpush.msra.mxu0 0.0
    %815 = vmatpush.msra.mxu0 0.0
    %816 = vmatpush.msra.mxu0 %v779
    %817 = vmatmul.f32.gmra.mxu0 %v147
    %v818 = vpop.f32.mrf.mxu0
    %v819 = vadd.f32 %v773, %v818
    %820 = vdwg.mxu0
    %821 = vst [vmem:[#allocation1] ss:$2 sm:$0xff] %v701
    %v822 = vld.sshfl [vmem:[#allocation1] sm:$0xff pattern:$0x75316420]
    %v823 = vld.sshfl [vmem:[#allocation1 + $0x8] sm:$0xff pattern:$0x75316420]
    %826 = vrot.lane.b32.xlu0 %v822, 15
    %v827 = vpop.permute.xlu0 %826
    %828 = vrot.lane.b32.xlu0 %v823, 15
    %v829 = vpop.permute.xlu0 %828
    %v830 = vsel %vm204, %v827, %v829
    %v831 = vsel %vm204, %v829, %v827
    %v832 = vmul.f32 %v831, %v208
    %v833 = vmul.f32 %v830, %v209
    %v835 = vsel %vm99, %v832, 0
    %v838 = vsel %vm99, %v833, 0
    %840 = vmatpush.msra.mxu0 0.0
    %841 = vmatpush.msra.mxu0 0.0
    %842 = vmatpush.msra.mxu0 0.0
    %843 = vmatpush.msra.mxu0 0.0
    %844 = vmatpush.msra.mxu0 0.0
    %845 = vmatpush.msra.mxu0 0.0
    %846 = vmatpush.msra.mxu0 0.0
    %847 = vmatpush.msra.mxu0 0.0
    %848 = vmatpush.msra.mxu0 0.0
    %849 = vmatpush.msra.mxu0 0.0
    %850 = vmatpush.msra.mxu0 0.0
    %851 = vmatpush.msra.mxu0 0.0
    %852 = vmatpush.msra.mxu0 0.0
    %853 = vmatpush.msra.mxu0 0.0
    %854 = vmatpush.msra.mxu0 0.0
    %855 = vmatpush.msra.mxu0 %v835
    %856 = vmatmul.f32.gmra.mxu0 %v215
    %v857 = vpop.f32.mrf.mxu0
    %v858 = vadd.f32 0.0, %v857
    %859 = vdwg.mxu0
    %860 = vmatpush.msra.mxu0 0.0
    %861 = vmatpush.msra.mxu0 0.0
    %862 = vmatpush.msra.mxu0 0.0
    %863 = vmatpush.msra.mxu0 0.0
    %864 = vmatpush.msra.mxu0 0.0
    %865 = vmatpush.msra.mxu0 0.0
    %866 = vmatpush.msra.mxu0 0.0
    %867 = vmatpush.msra.mxu0 0.0
    %868 = vmatpush.msra.mxu0 0.0
    %869 = vmatpush.msra.mxu0 0.0
    %870 = vmatpush.msra.mxu0 0.0
    %871 = vmatpush.msra.mxu0 0.0
    %872 = vmatpush.msra.mxu0 0.0
    %873 = vmatpush.msra.mxu0 0.0
    %874 = vmatpush.msra.mxu0 0.0
    %875 = vmatpush.msra.mxu0 %v838
    %876 = vmatmul.f32.gmra.mxu0 %v215
    %v877 = vpop.f32.mrf.mxu0
    %v878 = vadd.f32 0.0, %v877
    %879 = vdwg.mxu0
    %v880 = vadd.f32 %v799, %v858
    %v881 = vadd.f32 %v819, %v878
    %882 = vst [vmem:[#allocation1] ss:$2 sm:$0xff] %v701
    %v883 = vld.sshfl [vmem:[#allocation1] sm:$0xff pattern:$0x75316420]
    %v884 = vld.sshfl [vmem:[#allocation1 + $0x8] sm:$0xff pattern:$0x75316420]
    %887 = vrot.lane.b32.xlu0 %v883, 1
    %v888 = vpop.permute.xlu0 %887
    %889 = vrot.lane.b32.xlu0 %v884, 1
    %v890 = vpop.permute.xlu0 %889
    %v891 = vsel %vm274, %v888, %v890
    %v892 = vsel %vm274, %v890, %v888
    %v893 = vmul.f32 %v892, %v278
    %v894 = vmul.f32 %v891, %v279
    %v896 = vsel %vm99, %v893, 0
    %v899 = vsel %vm99, %v894, 0
    %901 = vmatpush.msra.mxu0 0.0
    %902 = vmatpush.msra.mxu0 0.0
    %903 = vmatpush.msra.mxu0 0.0
    %904 = vmatpush.msra.mxu0 0.0
    %905 = vmatpush.msra.mxu0 0.0
    %906 = vmatpush.msra.mxu0 0.0
    %907 = vmatpush.msra.mxu0 0.0
    %908 = vmatpush.msra.mxu0 0.0
    %909 = vmatpush.msra.mxu0 0.0
    %910 = vmatpush.msra.mxu0 0.0
    %911 = vmatpush.msra.mxu0 0.0
    %912 = vmatpush.msra.mxu0 0.0
    %913 = vmatpush.msra.mxu0 0.0
    %914 = vmatpush.msra.mxu0 0.0
    %915 = vmatpush.msra.mxu0 0.0
    %916 = vmatpush.msra.mxu0 %v896
    %917 = vmatmul.f32.gmra.mxu0 %v285
    %v918 = vpop.f32.mrf.mxu0
    %v919 = vadd.f32 0.0, %v918
    %920 = vdwg.mxu0
    %921 = vmatpush.msra.mxu0 0.0
    %922 = vmatpush.msra.mxu0 0.0
    %923 = vmatpush.msra.mxu0 0.0
    %924 = vmatpush.msra.mxu0 0.0
    %925 = vmatpush.msra.mxu0 0.0
    %926 = vmatpush.msra.mxu0 0.0
    %927 = vmatpush.msra.mxu0 0.0
    %928 = vmatpush.msra.mxu0 0.0
    %929 = vmatpush.msra.mxu0 0.0
    %930 = vmatpush.msra.mxu0 0.0
    %931 = vmatpush.msra.mxu0 0.0
    %932 = vmatpush.msra.mxu0 0.0
    %933 = vmatpush.msra.mxu0 0.0
    %934 = vmatpush.msra.mxu0 0.0
    %935 = vmatpush.msra.mxu0 0.0
    %936 = vmatpush.msra.mxu0 %v899
    %937 = vmatmul.f32.gmra.mxu0 %v285
    %v938 = vpop.f32.mrf.mxu0
    %v939 = vadd.f32 0.0, %v938
    %940 = vdwg.mxu0
    %v941 = vadd.f32 %v880, %v919
    %v942 = vadd.f32 %v881, %v939
    %v943 = vmul.f32 %v701, %v339
    %945 = vst [vmem:[#allocation1] ss:$2 sm:$0xff] %v943
    %v946 = vld.sshfl [vmem:[#allocation1] sm:$0xff pattern:$0x75316420]
    %v947 = vld.sshfl [vmem:[#allocation1 + $0x8] sm:$0xff pattern:$0x75316420]
    %v948 = vsel %vm99, %v946, 0
    %v950 = vsel %vm99, %v947, 0
    %952 = vmatpush.msra.mxu0 0.0
    %953 = vmatpush.msra.mxu0 0.0
    %954 = vmatpush.msra.mxu0 0.0
    %955 = vmatpush.msra.mxu0 0.0
    %956 = vmatpush.msra.mxu0 0.0
    %957 = vmatpush.msra.mxu0 0.0
    %958 = vmatpush.msra.mxu0 0.0
    %959 = vmatpush.msra.mxu0 0.0
    %960 = vmatpush.msra.mxu0 0.0
    %961 = vmatpush.msra.mxu0 0.0
    %962 = vmatpush.msra.mxu0 0.0
    %963 = vmatpush.msra.mxu0 0.0
    %964 = vmatpush.msra.mxu0 0.0
    %965 = vmatpush.msra.mxu0 0.0
    %966 = vmatpush.msra.mxu0 0.0
    %967 = vmatpush.msra.mxu0 %v948
    %968 = vmatmul.f32.gmra.mxu0 %v347
    %v969 = vpop.f32.mrf.mxu0
    %v970 = vadd.f32 0.0, %v969
    %971 = vdwg.mxu0
    %972 = vmatpush.msra.mxu0 0.0
    %973 = vmatpush.msra.mxu0 0.0
    %974 = vmatpush.msra.mxu0 0.0
    %975 = vmatpush.msra.mxu0 0.0
    %976 = vmatpush.msra.mxu0 0.0
    %977 = vmatpush.msra.mxu0 0.0
    %978 = vmatpush.msra.mxu0 0.0
    %979 = vmatpush.msra.mxu0 0.0
    %980 = vmatpush.msra.mxu0 0.0
    %981 = vmatpush.msra.mxu0 0.0
    %982 = vmatpush.msra.mxu0 0.0
    %983 = vmatpush.msra.mxu0 0.0
    %984 = vmatpush.msra.mxu0 0.0
    %985 = vmatpush.msra.mxu0 0.0
    %986 = vmatpush.msra.mxu0 0.0
    %987 = vmatpush.msra.mxu0 %v950
    %988 = vmatmul.f32.gmra.mxu0 %v347
    %v989 = vpop.f32.mrf.mxu0
    %v990 = vadd.f32 0.0, %v989
    %991 = vdwg.mxu0
    %v992 = vadd.f32 %v941, %v970
    %v993 = vadd.f32 %v942, %v990
    %994 = vst [vmem:[#allocation1] ss:$2 sm:$0xff] %v701
    %v995 = vld.sshfl [vmem:[#allocation1] sm:$0xff pattern:$0x75316420]
    %v996 = vld.sshfl [vmem:[#allocation1 + $0x8] sm:$0xff pattern:$0x75316420]
    %999 = vrot.lane.b32.xlu0 %v995, 127
    %v1000 = vpop.permute.xlu0 %999
    %1001 = vrot.lane.b32.xlu0 %v996, 127
    %v1002 = vpop.permute.xlu0 %1001
    %v1003 = vsel %vm404, %v1000, %v1002
    %v1004 = vsel %vm404, %v1002, %v1000
    %v1005 = vmul.f32 %v1003, %v408
    %v1006 = vmul.f32 %v1004, %v409
    %v1008 = vsel %vm99, %v1005, 0
    %v1011 = vsel %vm99, %v1006, 0
    %1013 = vmatpush.msra.mxu0 0.0
    %1014 = vmatpush.msra.mxu0 0.0
    %1015 = vmatpush.msra.mxu0 0.0
    %1016 = vmatpush.msra.mxu0 0.0
    %1017 = vmatpush.msra.mxu0 0.0
    %1018 = vmatpush.msra.mxu0 0.0
    %1019 = vmatpush.msra.mxu0 0.0
    %1020 = vmatpush.msra.mxu0 0.0
    %1021 = vmatpush.msra.mxu0 0.0
    %1022 = vmatpush.msra.mxu0 0.0
    %1023 = vmatpush.msra.mxu0 0.0
    %1024 = vmatpush.msra.mxu0 0.0
    %1025 = vmatpush.msra.mxu0 0.0
    %1026 = vmatpush.msra.mxu0 0.0
    %1027 = vmatpush.msra.mxu0 0.0
    %1028 = vmatpush.msra.mxu0 %v1008
    %1029 = vmatmul.f32.gmra.mxu0 %v415
    %v1030 = vpop.f32.mrf.mxu0
    %v1031 = vadd.f32 0.0, %v1030
    %1032 = vdwg.mxu0
    %1033 = vmatpush.msra.mxu0 0.0
    %1034 = vmatpush.msra.mxu0 0.0
    %1035 = vmatpush.msra.mxu0 0.0
    %1036 = vmatpush.msra.mxu0 0.0
    %1037 = vmatpush.msra.mxu0 0.0
    %1038 = vmatpush.msra.mxu0 0.0
    %1039 = vmatpush.msra.mxu0 0.0
    %1040 = vmatpush.msra.mxu0 0.0
    %1041 = vmatpush.msra.mxu0 0.0
    %1042 = vmatpush.msra.mxu0 0.0
    %1043 = vmatpush.msra.mxu0 0.0
    %1044 = vmatpush.msra.mxu0 0.0
    %1045 = vmatpush.msra.mxu0 0.0
    %1046 = vmatpush.msra.mxu0 0.0
    %1047 = vmatpush.msra.mxu0 0.0
    %1048 = vmatpush.msra.mxu0 %v1011
    %1049 = vmatmul.f32.gmra.mxu0 %v415
    %v1050 = vpop.f32.mrf.mxu0
    %v1051 = vadd.f32 0.0, %v1050
    %1052 = vdwg.mxu0
    %v1053 = vadd.f32 %v992, %v1031
    %v1054 = vadd.f32 %v993, %v1051
    %1055 = vst [vmem:[#allocation1] ss:$2 sm:$0xff] %v701
    %v1056 = vld.sshfl [vmem:[#allocation1] sm:$0xff pattern:$0x75316420]
    %v1057 = vld.sshfl [vmem:[#allocation1 + $0x8] sm:$0xff pattern:$0x75316420]
    %1060 = vrot.lane.b32.xlu0 %v1056, 113
    %v1061 = vpop.permute.xlu0 %1060
    %1062 = vrot.lane.b32.xlu0 %v1057, 113
    %v1063 = vpop.permute.xlu0 %1062
    %v1064 = vsel %vm474, %v1061, %v1063
    %v1065 = vsel %vm474, %v1063, %v1061
    %v1066 = vmul.f32 %v1064, %v478
    %v1067 = vmul.f32 %v1065, %v479
    %v1069 = vsel %vm99, %v1066, 0
    %v1072 = vsel %vm99, %v1067, 0
    %1074 = vmatpush.msra.mxu0 0.0
    %1075 = vmatpush.msra.mxu0 0.0
    %1076 = vmatpush.msra.mxu0 0.0
    %1077 = vmatpush.msra.mxu0 0.0
    %1078 = vmatpush.msra.mxu0 0.0
    %1079 = vmatpush.msra.mxu0 0.0
    %1080 = vmatpush.msra.mxu0 0.0
    %1081 = vmatpush.msra.mxu0 0.0
    %1082 = vmatpush.msra.mxu0 0.0
    %1083 = vmatpush.msra.mxu0 0.0
    %1084 = vmatpush.msra.mxu0 0.0
    %1085 = vmatpush.msra.mxu0 0.0
    %1086 = vmatpush.msra.mxu0 0.0
    %1087 = vmatpush.msra.mxu0 0.0
    %1088 = vmatpush.msra.mxu0 0.0
    %1089 = vmatpush.msra.mxu0 %v1069
    %1090 = vmatmul.f32.gmra.mxu0 %v485
    %v1091 = vpop.f32.mrf.mxu0
    %v1092 = vadd.f32 0.0, %v1091
    %1093 = vdwg.mxu0
    %1094 = vmatpush.msra.mxu0 0.0
    %1095 = vmatpush.msra.mxu0 0.0
    %1096 = vmatpush.msra.mxu0 0.0
    %1097 = vmatpush.msra.mxu0 0.0
    %1098 = vmatpush.msra.mxu0 0.0
    %1099 = vmatpush.msra.mxu0 0.0
    %1100 = vmatpush.msra.mxu0 0.0
    %1101 = vmatpush.msra.mxu0 0.0
    %1102 = vmatpush.msra.mxu0 0.0
    %1103 = vmatpush.msra.mxu0 0.0
    %1104 = vmatpush.msra.mxu0 0.0
    %1105 = vmatpush.msra.mxu0 0.0
    %1106 = vmatpush.msra.mxu0 0.0
    %1107 = vmatpush.msra.mxu0 0.0
    %1108 = vmatpush.msra.mxu0 0.0
    %1109 = vmatpush.msra.mxu0 %v1072
    %1110 = vmatmul.f32.gmra.mxu0 %v485
    %v1111 = vpop.f32.mrf.mxu0
    %v1112 = vadd.f32 0.0, %v1111
    %1113 = vdwg.mxu0
    %v1114 = vadd.f32 %v1053, %v1092
    %v1115 = vadd.f32 %v1054, %v1112
    %1116 = vst [vmem:[#allocation1] ss:$2 sm:$0xff] %v701
    %v1117 = vld.sshfl [vmem:[#allocation1] sm:$0xff pattern:$0x75316420]
    %v1118 = vld.sshfl [vmem:[#allocation1 + $0x8] sm:$0xff pattern:$0x75316420]
    %1121 = vrot.lane.b32.xlu0 %v1117, 112
    %v1122 = vpop.permute.xlu0 %1121
    %1123 = vrot.lane.b32.xlu0 %v1118, 112
    %v1124 = vpop.permute.xlu0 %1123
    %v1125 = vsel %vm544, %v1122, %v1124
    %v1126 = vsel %vm544, %v1124, %v1122
    %v1127 = vmul.f32 %v1125, %v548
    %v1128 = vmul.f32 %v1126, %v549
    %v1130 = vsel %vm99, %v1127, 0
    %v1133 = vsel %vm99, %v1128, 0
    %1135 = vmatpush.msra.mxu0 0.0
    %1136 = vmatpush.msra.mxu0 0.0
    %1137 = vmatpush.msra.mxu0 0.0
    %1138 = vmatpush.msra.mxu0 0.0
    %1139 = vmatpush.msra.mxu0 0.0
    %1140 = vmatpush.msra.mxu0 0.0
    %1141 = vmatpush.msra.mxu0 0.0
    %1142 = vmatpush.msra.mxu0 0.0
    %1143 = vmatpush.msra.mxu0 0.0
    %1144 = vmatpush.msra.mxu0 0.0
    %1145 = vmatpush.msra.mxu0 0.0
    %1146 = vmatpush.msra.mxu0 0.0
    %1147 = vmatpush.msra.mxu0 0.0
    %1148 = vmatpush.msra.mxu0 0.0
    %1149 = vmatpush.msra.mxu0 0.0
    %1150 = vmatpush.msra.mxu0 %v1130
    %1151 = vmatmul.f32.gmra.mxu0 %v555
    %v1152 = vpop.f32.mrf.mxu0
    %v1153 = vadd.f32 0.0, %v1152
    %1154 = vdwg.mxu0
    %1155 = vmatpush.msra.mxu0 0.0
    %1156 = vmatpush.msra.mxu0 0.0
    %1157 = vmatpush.msra.mxu0 0.0
    %1158 = vmatpush.msra.mxu0 0.0
    %1159 = vmatpush.msra.mxu0 0.0
    %1160 = vmatpush.msra.mxu0 0.0
    %1161 = vmatpush.msra.mxu0 0.0
    %1162 = vmatpush.msra.mxu0 0.0
    %1163 = vmatpush.msra.mxu0 0.0
    %1164 = vmatpush.msra.mxu0 0.0
    %1165 = vmatpush.msra.mxu0 0.0
    %1166 = vmatpush.msra.mxu0 0.0
    %1167 = vmatpush.msra.mxu0 0.0
    %1168 = vmatpush.msra.mxu0 0.0
    %1169 = vmatpush.msra.mxu0 0.0
    %1170 = vmatpush.msra.mxu0 %v1133
    %1171 = vmatmul.f32.gmra.mxu0 %v555
    %v1172 = vpop.f32.mrf.mxu0
    %v1173 = vadd.f32 0.0, %v1172
    %1174 = vdwg.mxu0
    %v1175 = vadd.f32 %v1114, %v1153
    %v1176 = vadd.f32 %v1115, %v1173
    %1177 = vst [vmem:[#allocation1] ss:$2 sm:$0xff] %v701
    %v1178 = vld.sshfl [vmem:[#allocation1] sm:$0xff pattern:$0x75316420]
    %v1179 = vld.sshfl [vmem:[#allocation1 + $0x8] sm:$0xff pattern:$0x75316420]
    %1182 = vrot.lane.b32.xlu0 %v1178, 111
    %v1183 = vpop.permute.xlu0 %1182
    %1184 = vrot.lane.b32.xlu0 %v1179, 111
    %v1185 = vpop.permute.xlu0 %1184
    %v1186 = vsel %vm614, %v1183, %v1185
    %v1187 = vsel %vm614, %v1185, %v1183
    %v1188 = vmul.f32 %v1186, %v618
    %v1189 = vmul.f32 %v1187, %v619
    %v1191 = vsel %vm99, %v1188, 0
    %v1194 = vsel %vm99, %v1189, 0
    %1196 = vmatpush.msra.mxu0 0.0
    %1197 = vmatpush.msra.mxu0 0.0
    %1198 = vmatpush.msra.mxu0 0.0
    %1199 = vmatpush.msra.mxu0 0.0
    %1200 = vmatpush.msra.mxu0 0.0
    %1201 = vmatpush.msra.mxu0 0.0
    %1202 = vmatpush.msra.mxu0 0.0
    %1203 = vmatpush.msra.mxu0 0.0
    %1204 = vmatpush.msra.mxu0 0.0
    %1205 = vmatpush.msra.mxu0 0.0
    %1206 = vmatpush.msra.mxu0 0.0
    %1207 = vmatpush.msra.mxu0 0.0
    %1208 = vmatpush.msra.mxu0 0.0
    %1209 = vmatpush.msra.mxu0 0.0
    %1210 = vmatpush.msra.mxu0 0.0
    %1211 = vmatpush.msra.mxu0 %v1191
    %1212 = vmatmul.f32.gmra.mxu0 %v625
    %v1213 = vpop.f32.mrf.mxu0
    %v1214 = vadd.f32 0.0, %v1213
    %1215 = vdwg.mxu0
    %1216 = vmatpush.msra.mxu0 0.0
    %1217 = vmatpush.msra.mxu0 0.0
    %1218 = vmatpush.msra.mxu0 0.0
    %1219 = vmatpush.msra.mxu0 0.0
    %1220 = vmatpush.msra.mxu0 0.0
    %1221 = vmatpush.msra.mxu0 0.0
    %1222 = vmatpush.msra.mxu0 0.0
    %1223 = vmatpush.msra.mxu0 0.0
    %1224 = vmatpush.msra.mxu0 0.0
    %1225 = vmatpush.msra.mxu0 0.0
    %1226 = vmatpush.msra.mxu0 0.0
    %1227 = vmatpush.msra.mxu0 0.0
    %1228 = vmatpush.msra.mxu0 0.0
    %1229 = vmatpush.msra.mxu0 0.0
    %1230 = vmatpush.msra.mxu0 0.0
    %1231 = vmatpush.msra.mxu0 %v1194
    %1232 = vmatmul.f32.gmra.mxu0 %v625
    %v1233 = vpop.f32.mrf.mxu0
    %v1234 = vadd.f32 0.0, %v1233
    %1235 = vdwg.mxu0
    %v1236 = vadd.f32 %v1175, %v1214
    %v1237 = vadd.f32 %v1176, %v1234
    %v1238 = vadd.f32 %v1236, %v678
    %v1239 = vadd.f32 %v1237, %v678
    %v1240 = vmin.f32 %v1238, 0.0
    %v1241 = vmin.f32 %v1239, 0.0
    %v1242 = vmul.f32 %v1240, 1.442695
    %v1243 = vpow.pop %v1242
    %v1244 = vmul.f32 %v1241, 1.442695
    %v1245 = vpow.pop %v1244
    %v1246 = vsub.f32 %v1243, 1.0
    %v1247 = vsub.f32 %v1245, 1.0
    %v1248 = vmul.f32 %v1246, 1.6732632
    %v1249 = vmul.f32 %v1247, 1.6732632
    %vm1250 = vcmp.gt.f32.partialorder %v1238, 0.0
    %vm1251 = vcmp.gt.f32.partialorder %v1239, 0.0
    %v1252 = vsel %vm1250, %v1238, %v1248
    %v1253 = vsel %vm1251, %v1239, %v1249
    %v1254 = vmul.f32 %v1252, 1.050701
    %v1255 = vmul.f32 %v1253, 1.050701
    %s1256 = scalar_lea.vmem [#allocation2], 16
    %1257 = vst [vmem:[%s1256] sm:$0xff] %v1254
    %1258 = vst [vmem:[%s1256 + $0x8] sm:$0xff] %v1255
    // Predicated region
    $region18: #{tpu_custom_call.1} parent=1 // pred_check
      _
    $region19: #{tpu_custom_call.1} parent=1 // pred_check_branch
      %1260 = sbr.rel (0) target = $region21
    $region20: #{tpu_custom_call.1} parent=1 // pred_region
      %1262 = vsyncadd [#allocation3], 0
      %s1263 = sshll.u32 [#allocation2], 4
      %s1264 = int_to_ptr.vmem [resolvable:$true] %s1263
      %s1265 = sshll.u32 %s4, 4
      %s1266 = int_to_ptr.hbm [resolvable:$true] %s1265
      %1271 = dma.vmem_to_hbm [thread:$0]  %s1264, 512, %s1266, [#allocation3], 256, 256, 16
    $region21: #{tpu_custom_call.1} parent=1 // pred_fallthru
      _
    // Predicated region
    $region22: #{tpu_custom_call.1} parent=1 // pred_check
      _
    $region23: #{tpu_custom_call.1} parent=1 // pred_check_branch
      %1273 = sbr.rel (0) target = $region25
    $region24: #{tpu_custom_call.1} parent=1 // pred_region
      %1275 = dma.done [#allocation3], 512
    $region25: #{tpu_custom_call.1} parent=1 // pred_fallthru
      _
    %1276 = vsyncpa [#allocation3], 1

</llo_original>
